<compile_context>
chip_gen: v5e
topology: v5e:2x2
jax: 0.10.0
libtpu: 0.0.40
codegen_flags: <defaults>
</compile_context>

<pallas_src>
import functools
import math

import jax
import jax.numpy as jnp
from jax.experimental import pallas as pl
from jax.experimental.pallas import tpu as pltpu

MM_DTYPE = jnp.bfloat16     # MXU matmul operand dtype (f32 accumulation)
LN_EPS = 1e-12              # BERT LayerNorm eps
NUM_HEADS = 4


# ----------------------------------------------------------------------------
# helpers
# ----------------------------------------------------------------------------
def _round_up(x, m):
    return ((x + m - 1) // m) * m


def _pick_row_tile(rows):
    # biggest row tile that keeps (x, out, bf16 weights, f32 FFN intermediate)
    # comfortably inside the default scoped-VMEM budget at BERT-base sizes.
    if rows >= 256:
        return 256
    if rows >= 128:
        return 128
    return _round_up(rows, 8)


def _pad_rows(a, rows_padded):
    r = a.shape[0]
    if rows_padded == r:
        return a
    pad = [(0, rows_padded - r)] + [(0, 0)] * (a.ndim - 1)
    return jnp.pad(a, pad)


def _layernorm(y, gamma, beta, eps):
    mu = jnp.mean(y, axis=-1, keepdims=True)
    d = y - mu
    var = jnp.mean(d * d, axis=-1, keepdims=True)
    return d * jax.lax.rsqrt(var + eps) * gamma + beta


# ----------------------------------------------------------------------------
# kernels
# ----------------------------------------------------------------------------
def matmul_bias_kernel(x_ref, w_ref, b_ref, o_ref):
    x = x_ref[...].astype(MM_DTYPE)
    w = w_ref[...].astype(MM_DTYPE)
    o_ref[...] = (jnp.dot(x, w, preferred_element_type=jnp.float32)
                  + b_ref[...]).astype(o_ref.dtype)


def add3_ln_kernel(a_ref, b_ref, c_ref, g_ref, beta_ref, o_ref, *, eps):
    y = a_ref[...] + b_ref[...] + c_ref[...]
    o_ref[...] = _layernorm(y, g_ref[...], beta_ref[...], eps).astype(o_ref.dtype)


def attention_kernel(q_ref, k_ref, v_ref, bias_ref, o_ref, *, scale):
    # one (batch, head) slice per grid step: q/k/v are (S, dH), bias is (1, S)
    q = q_ref[...].astype(MM_DTYPE)
    k = k_ref[...].astype(MM_DTYPE)
    v = v_ref[...].astype(MM_DTYPE)
    s = jax.lax.dot_general(q, k, (((1,), (1,)), ((), ())),
                            preferred_element_type=jnp.float32) * scale
    s = s + bias_ref[...]                                   # mask over keys
    m = jnp.max(s, axis=-1, keepdims=True)
    e = jnp.exp(s - m)
    p = e * pl.reciprocal(jnp.sum(e, axis=-1, keepdims=True), approx=True)
    o_ref[...] = jnp.dot(p.astype(MM_DTYPE), v,
                         preferred_element_type=jnp.float32).astype(o_ref.dtype)


def proj_add_ln_kernel(x_ref, res_ref, w_ref, b_ref, g_ref, beta_ref, o_ref, *, eps):
    x = x_ref[...].astype(MM_DTYPE)
    w = w_ref[...].astype(MM_DTYPE)
    y = (jnp.dot(x, w, preferred_element_type=jnp.float32)
         + b_ref[...] + res_ref[...])
    o_ref[...] = _layernorm(y, g_ref[...], beta_ref[...], eps).astype(o_ref.dtype)


def ffn_add_ln_kernel(x_ref, w1_ref, b1_ref, w2_ref, b2_ref, g_ref, beta_ref,
                      o_ref, *, eps):
    x = x_ref[...]                                          # f32, also residual
    h = (jnp.dot(x.astype(MM_DTYPE), w1_ref[...].astype(MM_DTYPE),
                 preferred_element_type=jnp.float32) + b1_ref[...])
    h = jax.nn.gelu(h, approximate=True)
    y = (jnp.dot(h.astype(MM_DTYPE), w2_ref[...].astype(MM_DTYPE),
                 preferred_element_type=jnp.float32) + b2_ref[...] + x)
    o_ref[...] = _layernorm(y, g_ref[...], beta_ref[...], eps).astype(o_ref.dtype)


# ----------------------------------------------------------------------------
# pallas_call wrappers
# ----------------------------------------------------------------------------
def _row_grid_call(kernel, row_inputs, const_inputs, out_dim,
                   out_dtype=jnp.float32):
    """Grid over row tiles. `row_inputs` share the row axis (tiled); every
    `const_inputs` entry (weights/biases/LN params) uses a constant index_map
    so it stays resident in VMEM across the whole grid."""
    rows = row_inputs[0].shape[0]
    tm = _pick_row_tile(rows)
    rows_p = _round_up(rows, tm)
    padded = [_pad_rows(a, rows_p) for a in row_inputs]

    in_specs = [pl.BlockSpec((tm, a.shape[1]), lambda r: (r, 0)) for a in padded]
    in_specs += [pl.BlockSpec(c.shape, lambda r, n=c.ndim: (0,) * n)
                 for c in const_inputs]

    out = pl.pallas_call(
        kernel,
        out_shape=jax.ShapeDtypeStruct((rows_p, out_dim), out_dtype),
        grid=(rows_p // tm,),
        in_specs=in_specs,
        out_specs=pl.BlockSpec((tm, out_dim), lambda r: (r, 0)),
        compiler_params=pltpu.CompilerParams(dimension_semantics=("parallel",)),
    )(*padded, *const_inputs)
    return out[:rows]


def _matmul_bias(x, w, b, out_dtype=jnp.float32):
    return _row_grid_call(matmul_bias_kernel, [x], [w, b], w.shape[1],
                          out_dtype=out_dtype)


def _add3_ln(a, b, c, g, beta):
    return _row_grid_call(functools.partial(add3_ln_kernel, eps=LN_EPS),
                          [a, b, c], [g, beta], a.shape[1])


def _proj_add_ln(x, res, w, b, g, beta):
    return _row_grid_call(functools.partial(proj_add_ln_kernel, eps=LN_EPS),
                          [x, res], [w, b, g, beta], w.shape[1])


def _ffn_add_ln(x, w1, b1, w2, b2, g, beta):
    return _row_grid_call(functools.partial(ffn_add_ln_kernel, eps=LN_EPS),
                          [x], [w1, b1, w2, b2, g, beta], w2.shape[1])


def _attention(q, k, v, mask_bias):
    # q/k/v: (B, nH, S, dH);  mask_bias: (B, 1, S)
    B, nH, S, dH = q.shape
    scale = 1.0 / math.sqrt(dH)
    kern = functools.partial(attention_kernel, scale=scale)
    return pl.pallas_call(
        kern,
        out_shape=jax.ShapeDtypeStruct((B, nH, S, dH), MM_DTYPE),
        grid=(B, nH),
        in_specs=[
            pl.BlockSpec((None, None, S, dH), lambda b, h: (b, h, 0, 0)),   # q
            pl.BlockSpec((None, None, S, dH), lambda b, h: (b, h, 0, 0)),   # k
            pl.BlockSpec((None, None, S, dH), lambda b, h: (b, h, 0, 0)),   # v
            pl.BlockSpec((None, 1, S), lambda b, h: (b, 0, 0)),             # mask
        ],
        out_specs=pl.BlockSpec((None, None, S, dH), lambda b, h: (b, h, 0, 0)),
        compiler_params=pltpu.CompilerParams(
            dimension_semantics=("parallel", "parallel")),
    )(q, k, v, mask_bias)


# ----------------------------------------------------------------------------
# Bert.forward : (x, segs, mask) -> last hidden state
# ----------------------------------------------------------------------------
def bert_forward(params, x, segs, mask):
    B, S = x.shape
    H = params['word_emb'].shape[1]
    nH = NUM_HEADS
    dH = H // nH
    R = B * S

    # embedding gathers stay in XLA (see TODO at top); sum + LN in Pallas.
    word = jnp.take(params['word_emb'], x, axis=0).reshape(R, H)
    ttype = jnp.take(params['type_emb'], segs, axis=0).reshape(R, H)
    pos = jnp.broadcast_to(params['pos_emb'][None, :S, :], (B, S, H)).reshape(R, H)
    hidden = _add3_ln(word, ttype, pos, params['emb_ln_g'], params['emb_ln_b'])

    # additive attention-mask bias (HF BERT style)
    mask_bias = ((1.0 - mask.astype(jnp.float32)) * -10000.0).reshape(B, 1, S)

    for lp in params['layers']:
        # fused QKV projection; stored bf16 (it is consumed as a bf16 MXU
        # operand) to halve HBM traffic of this intermediate + the transposes.
        qkv = _matmul_bias(hidden, lp['w_qkv'], lp['b_qkv'],
                           out_dtype=MM_DTYPE)                        # (R, 3H)
        qkv = qkv.reshape(B, S, 3, nH, dH)
        q = qkv[:, :, 0].transpose(0, 2, 1, 3)                        # (B,nH,S,dH)
        k = qkv[:, :, 1].transpose(0, 2, 1, 3)
        v = qkv[:, :, 2].transpose(0, 2, 1, 3)

        ctx = _attention(q, k, v, mask_bias)                          # bf16
        ctx = ctx.transpose(0, 2, 1, 3).reshape(R, H)

        attn_out = _proj_add_ln(ctx, hidden, lp['w_o'], lp['b_o'],
                                lp['ln1_g'], lp['ln1_b'])
        hidden = _ffn_add_ln(attn_out, lp['w_ffn1'], lp['b_ffn1'],
                             lp['w_ffn2'], lp['b_ffn2'],
                             lp['ln2_g'], lp['ln2_b'])
    return hidden.reshape(B, S, H)


def cast_matmul_weights(params):
    """Pre-cast the large matmul weight matrices to bf16 once (outside jit).
    Biases / LayerNorm params / embedding tables stay f32 (exactly matching
    the reference, which casts weights to bf16 at each matmul)."""
    new = dict(params)
    new['layers'] = []
    for lp in params['layers']:
        nlp = dict(lp)
        for name in ('w_qkv', 'w_o', 'w_ffn1', 'w_ffn2'):
            nlp[name] = lp[name].astype(MM_DTYPE)
        new['layers'].append(nlp)
    return new


# ----------------------------------------------------------------------------
# plain-JAX reference (same math, same bf16 matmul casts) for validation
# ----------------------------------------------------------------------------
def reference_forward(params, x, segs, mask):
    B, S = x.shape
    H = params['word_emb'].shape[1]
    nH = NUM_HEADS
    dH = H // nH

    def mm(a, b):
        return jnp.dot(a.astype(MM_DTYPE), b.astype(MM_DTYPE),
                       preferred_element_type=jnp.float32)

    def ln(y, g, b):
        return _layernorm(y, g, b, LN_EPS)

    word = jnp.take(params['word_emb'], x, axis=0)
    ttype = jnp.take(params['type_emb'], segs, axis=0)
    pos = jnp.broadcast_to(params['pos_emb'][None, :S, :], (B, S, H))
    hidden = ln(word + ttype + pos, params['emb_ln_g'], params['emb_ln_b'])

    bias = ((1.0 - mask.astype(jnp.float32)) * -10000.0)[:, None, None, :]
    for lp in params['layers']:
        flat = hidden.reshape(B * S, H)
        qkv = (mm(flat, lp['w_qkv']) + lp['b_qkv']).reshape(B, S, 3, nH, dH)
        q = qkv[:, :, 0].transpose(0, 2, 1, 3)
        k = qkv[:, :, 1].transpose(0, 2, 1, 3)
        v = qkv[:, :, 2].transpose(0, 2, 1, 3)
        s = jnp.einsum('bhqd,bhkd->bhqk', q.astype(MM_DTYPE), k.astype(MM_DTYPE),
                       preferred_element_type=jnp.float32) / math.sqrt(dH) + bias
        p = jax.nn.softmax(s, axis=-1)
        ctx = jnp.einsum('bhqk,bhkd->bhqd', p.astype(MM_DTYPE), v.astype(MM_DTYPE),
                         preferred_element_type=jnp.float32)
        ctx = ctx.transpose(0, 2, 1, 3).reshape(B * S, H)
        attn_out = ln(mm(ctx, lp['w_o']) + lp['b_o'] + flat,
                      lp['ln1_g'], lp['ln1_b'])
        h1 = jax.nn.gelu(mm(attn_out, lp['w_ffn1']) + lp['b_ffn1'],
                         approximate=True)
        ffn_out = ln(mm(h1, lp['w_ffn2']) + lp['b_ffn2'] + attn_out,
                     lp['ln2_g'], lp['ln2_b'])
        hidden = ffn_out.reshape(B, S, H)
    return hidden


# ----------------------------------------------------------------------------
# random init of the same architecture (pretrained weights not loadable here)
# ----------------------------------------------------------------------------
def init_params(key, vocab_size, hidden, num_layers, ffn_dim, max_pos):
    keys = jax.random.split(key, 3 + num_layers)

    def dense(k, shape, scale=0.02):
        return jax.random.normal(k, shape, jnp.float32) * scale

    params = {
        'word_emb': dense(keys[0], (vocab_size, hidden)),
        'pos_emb': dense(keys[1], (max_pos, hidden)),
        'type_emb': dense(keys[2], (2, hidden)),
        'emb_ln_g': jnp.ones((1, hidden), jnp.float32),
        'emb_ln_b': jnp.zeros((1, hidden), jnp.float32),
        'layers': [],
    }
    for i in range(num_layers):
        ks = jax.random.split(keys[3 + i], 8)
        params['layers'].append({
            'w_qkv': dense(ks[0], (hidden, 3 * hidden)),
            'b_qkv': dense(ks[1], (1, 3 * hidden)),
            'w_o': dense(ks[2], (hidden, hidden)),
            'b_o': dense(ks[3], (1, hidden)),
            'ln1_g': jnp.ones((1, hidden), jnp.float32),
            'ln1_b': jnp.zeros((1, hidden), jnp.float32),
            'w_ffn1': dense(ks[4], (hidden, ffn_dim)),
            'b_ffn1': dense(ks[5], (1, ffn_dim)),
            'w_ffn2': dense(ks[6], (ffn_dim, hidden)),
            'b_ffn2': dense(ks[7], (1, hidden)),
            'ln2_g': jnp.ones((1, hidden), jnp.float32),
            'ln2_b': jnp.zeros((1, hidden), jnp.float32),
        })
    return params


if __name__ == "__main__":
    B, S, H, NUM_LAYERS, VOCAB, MAX_POS = 2, 8, 32, 2, 64, 32
    FFN = 4 * H
    assert H % NUM_HEADS == 0

    key = jax.random.PRNGKey(0)
    kp, kx, ks = jax.random.split(key, 3)
    params = init_params(kp, VOCAB, H, NUM_LAYERS, FFN, MAX_POS)
    params_bf16w = cast_matmul_weights(params)   # one-time weight cast

    x = jax.random.randint(kx, (B, S), 0, VOCAB, jnp.int32)       # token ids
    segs = jax.random.randint(ks, (B, S), 0, 2, jnp.int32)        # token_type_ids
    mask = jnp.ones((B, S), jnp.int32).at[1, 6:].set(0)           # attention_mask

    top_vec = jax.jit(bert_forward)(params_bf16w, x, segs, mask)
    top_vec = jax.block_until_ready(top_vec)

    ref = reference_forward(params, x, segs, mask)
    assert top_vec.shape == (B, S, H)
    assert bool(jnp.all(jnp.isfinite(top_vec)))
    # tolerance covers approx-reciprocal softmax normalization (~1e-3 rel)
    assert jnp.allclose(top_vec, ref, atol=2e-2, rtol=2e-2), (
        "mismatch vs reference, max abs diff = "
        f"{float(jnp.max(jnp.abs(top_vec - ref)))}")

    print("KERNEL_OK")
</pallas_src>

<mosaic_0001>
module attributes {stable_mosaic.version = 11 : i64} {
  func.func @add3_ln_kernel(%arg0: i32, %arg1: memref<16x32xf32, #tpu.memory_space<vmem>>, %arg2: memref<16x32xf32, #tpu.memory_space<vmem>>, %arg3: memref<16x32xf32, #tpu.memory_space<vmem>>, %arg4: memref<1x32xf32, #tpu.memory_space<vmem>>, %arg5: memref<1x32xf32, #tpu.memory_space<vmem>>, %arg6: memref<16x32xf32, #tpu.memory_space<vmem>>) attributes {dimension_semantics = [#tpu.dimension_semantics<parallel>], iteration_bounds = array<i64: 1>, scalar_prefetch = 0 : i64, scratch_operands = 0 : i64, tpu.core_type = #tpu.core_type<tc>, window_params = [{transform_indices = @transform_0, window_bounds = array<i64: 16, 32>}, {transform_indices = @transform_1, window_bounds = array<i64: 16, 32>}, {transform_indices = @transform_2, window_bounds = array<i64: 16, 32>}, {pipeline_mode = #tpu.pipeline_mode<synchronous>, transform_indices = @transform_3, window_bounds = array<i64: 1, 32>}, {pipeline_mode = #tpu.pipeline_mode<synchronous>, transform_indices = @transform_4, window_bounds = array<i64: 1, 32>}, {transform_indices = @transform_5, window_bounds = array<i64: 16, 32>}]} {
    %c0 = arith.constant 0 : index
    %c0_0 = arith.constant 0 : index
    %0 = vector.load %arg1[%c0, %c0_0] : memref<16x32xf32, #tpu.memory_space<vmem>>, vector<16x32xf32>
    %c0_1 = arith.constant 0 : index
    %c0_2 = arith.constant 0 : index
    %1 = vector.load %arg2[%c0_1, %c0_2] : memref<16x32xf32, #tpu.memory_space<vmem>>, vector<16x32xf32>
    %2 = arith.addf %0, %1 : vector<16x32xf32>
    %c0_3 = arith.constant 0 : index
    %c0_4 = arith.constant 0 : index
    %3 = vector.load %arg3[%c0_3, %c0_4] : memref<16x32xf32, #tpu.memory_space<vmem>>, vector<16x32xf32>
    %4 = arith.addf %2, %3 : vector<16x32xf32>
    %c0_5 = arith.constant 0 : index
    %c0_6 = arith.constant 0 : index
    %5 = vector.load %arg4[%c0_5, %c0_6] : memref<1x32xf32, #tpu.memory_space<vmem>>, vector<1x32xf32>
    %c0_7 = arith.constant 0 : index
    %c0_8 = arith.constant 0 : index
    %6 = vector.load %arg5[%c0_7, %c0_8] : memref<1x32xf32, #tpu.memory_space<vmem>>, vector<1x32xf32>
    %cst = arith.constant dense<0.000000e+00> : vector<16xf32>
    %7 = vector.multi_reduction <add>, %4, %cst [1] : vector<16x32xf32> to vector<16xf32>
    %8 = vector.shape_cast %7 : vector<16xf32> to vector<16x1xf32>
    %cst_9 = arith.constant 3.200000e+01 : f32
    %9 = vector.broadcast %cst_9 : f32 to vector<16x1xf32>
    %10 = arith.divf %8, %9 : vector<16x1xf32>
    %11 = vector.broadcast %10 : vector<16x1xf32> to vector<16x32xf32>
    %12 = arith.subf %4, %11 : vector<16x32xf32>
    %13 = arith.mulf %12, %12 : vector<16x32xf32>
    %cst_10 = arith.constant dense<0.000000e+00> : vector<16xf32>
    %14 = vector.multi_reduction <add>, %13, %cst_10 [1] : vector<16x32xf32> to vector<16xf32>
    %15 = vector.shape_cast %14 : vector<16xf32> to vector<16x1xf32>
    %cst_11 = arith.constant 3.200000e+01 : f32
    %16 = vector.broadcast %cst_11 : f32 to vector<16x1xf32>
    %17 = arith.divf %15, %16 : vector<16x1xf32>
    %cst_12 = arith.constant 9.99999996E-13 : f32
    %18 = vector.broadcast %cst_12 : f32 to vector<16x1xf32>
    %19 = arith.addf %17, %18 : vector<16x1xf32>
    %20 = math.rsqrt %19 : vector<16x1xf32>
    %21 = vector.broadcast %20 : vector<16x1xf32> to vector<16x32xf32>
    %22 = arith.mulf %12, %21 : vector<16x32xf32>
    %23 = vector.broadcast %5 : vector<1x32xf32> to vector<16x32xf32>
    %24 = arith.mulf %22, %23 : vector<16x32xf32>
    %25 = vector.broadcast %6 : vector<1x32xf32> to vector<16x32xf32>
    %26 = arith.addf %24, %25 : vector<16x32xf32>
    %c0_13 = arith.constant 0 : index
    %c0_14 = arith.constant 0 : index
    %27 = vector.load %arg6[%c0_13, %c0_14] : memref<16x32xf32, #tpu.memory_space<vmem>>, vector<16x32xf32>
    tpu.vector_store %arg6[%c0_13, %c0_14], %26 {strides = array<i32>} : memref<16x32xf32, #tpu.memory_space<vmem>>, vector<16x32xf32>,
    return
  }
  func.func @transform_0(%arg0: i32) -> (i32, i32) {
    %c0_i32 = arith.constant 0 : i32
    %c0_i32_0 = arith.constant 0 : i32
    return %arg0, %c0_i32 : i32, i32
  }
  func.func @transform_1(%arg0: i32) -> (i32, i32) {
    %c0_i32 = arith.constant 0 : i32
    %c0_i32_0 = arith.constant 0 : i32
    return %arg0, %c0_i32 : i32, i32
  }
  func.func @transform_2(%arg0: i32) -> (i32, i32) {
    %c0_i32 = arith.constant 0 : i32
    %c0_i32_0 = arith.constant 0 : i32
    return %arg0, %c0_i32 : i32, i32
  }
  func.func @transform_3(%arg0: i32) -> (i32, i32) {
    %c0_i32 = arith.constant 0 : i32
    %c0_i32_0 = arith.constant 0 : i32
    %c0_i32_1 = arith.constant 0 : i32
    return %c0_i32, %c0_i32_0 : i32, i32
  }
  func.func @transform_4(%arg0: i32) -> (i32, i32) {
    %c0_i32 = arith.constant 0 : i32
    %c0_i32_0 = arith.constant 0 : i32
    %c0_i32_1 = arith.constant 0 : i32
    return %c0_i32, %c0_i32_0 : i32, i32
  }
  func.func @transform_5(%arg0: i32) -> (i32, i32) {
    %c0_i32 = arith.constant 0 : i32
    %c0_i32_0 = arith.constant 0 : i32
    return %arg0, %c0_i32 : i32, i32
  }
}

module attributes {stable_mosaic.version = 11 : i64} {
  func.func @matmul_bias_kernel(%arg0: i32, %arg1: memref<16x32xf32, #tpu.memory_space<vmem>>, %arg2: memref<32x96xbf16, #tpu.memory_space<vmem>>, %arg3: memref<1x96xf32, #tpu.memory_space<vmem>>, %arg4: memref<16x96xbf16, #tpu.memory_space<vmem>>) attributes {dimension_semantics = [#tpu.dimension_semantics<parallel>], iteration_bounds = array<i64: 1>, scalar_prefetch = 0 : i64, scratch_operands = 0 : i64, tpu.core_type = #tpu.core_type<tc>, window_params = [{transform_indices = @transform_0, window_bounds = array<i64: 16, 32>}, {pipeline_mode = #tpu.pipeline_mode<synchronous>, transform_indices = @transform_1, window_bounds = array<i64: 32, 96>}, {pipeline_mode = #tpu.pipeline_mode<synchronous>, transform_indices = @transform_2, window_bounds = array<i64: 1, 96>}, {transform_indices = @transform_3, window_bounds = array<i64: 16, 96>}]} {
    %c0 = arith.constant 0 : index
    %c0_0 = arith.constant 0 : index
    %0 = vector.load %arg1[%c0, %c0_0] : memref<16x32xf32, #tpu.memory_space<vmem>>, vector<16x32xf32>
    %1 = arith.truncf %0 : vector<16x32xf32> to vector<16x32xbf16>
    %c0_1 = arith.constant 0 : index
    %c0_2 = arith.constant 0 : index
    %2 = vector.load %arg2[%c0_1, %c0_2] : memref<32x96xbf16, #tpu.memory_space<vmem>>, vector<32x96xbf16>
    %cst = arith.constant dense<0.000000e+00> : vector<16x96xf32>
    %3 = tpu.matmul %1, %2, %cst {dimension_numbers = #tpu.dot_dimension_numbers<[1], [0], [0], [1], [0, 0, 1, 1], [], []>} : vector<16x32xbf16>, vector<32x96xbf16>, vector<16x96xf32> -> vector<16x96xf32>
    %c0_3 = arith.constant 0 : index
    %c0_4 = arith.constant 0 : index
    %4 = vector.load %arg3[%c0_3, %c0_4] : memref<1x96xf32, #tpu.memory_space<vmem>>, vector<1x96xf32>
    %5 = vector.broadcast %4 : vector<1x96xf32> to vector<16x96xf32>
    %6 = arith.addf %3, %5 : vector<16x96xf32>
    %7 = arith.truncf %6 : vector<16x96xf32> to vector<16x96xbf16>
    %c0_5 = arith.constant 0 : index
    %c0_6 = arith.constant 0 : index
    %8 = vector.load %arg4[%c0_5, %c0_6] : memref<16x96xbf16, #tpu.memory_space<vmem>>, vector<16x96xbf16>
    tpu.vector_store %arg4[%c0_5, %c0_6], %7 {strides = array<i32>} : memref<16x96xbf16, #tpu.memory_space<vmem>>, vector<16x96xbf16>,
    return
  }
  func.func @transform_0(%arg0: i32) -> (i32, i32) {
    %c0_i32 = arith.constant 0 : i32
    %c0_i32_0 = arith.constant 0 : i32
    return %arg0, %c0_i32 : i32, i32
  }
  func.func @transform_1(%arg0: i32) -> (i32, i32) {
    %c0_i32 = arith.constant 0 : i32
    %c0_i32_0 = arith.constant 0 : i32
    %c0_i32_1 = arith.constant 0 : i32
    return %c0_i32, %c0_i32_0 : i32, i32
  }
  func.func @transform_2(%arg0: i32) -> (i32, i32) {
    %c0_i32 = arith.constant 0 : i32
    %c0_i32_0 = arith.constant 0 : i32
    %c0_i32_1 = arith.constant 0 : i32
    return %c0_i32, %c0_i32_0 : i32, i32
  }
  func.func @transform_3(%arg0: i32) -> (i32, i32) {
    %c0_i32 = arith.constant 0 : i32
    %c0_i32_0 = arith.constant 0 : i32
    return %arg0, %c0_i32 : i32, i32
  }
}

module attributes {stable_mosaic.version = 11 : i64} {
  func.func @attention_kernel(%arg0: i32, %arg1: i32, %arg2: memref<1x1x8x8xbf16, #tpu.memory_space<vmem>>, %arg3: memref<1x1x8x8xbf16, #tpu.memory_space<vmem>>, %arg4: memref<1x1x8x8xbf16, #tpu.memory_space<vmem>>, %arg5: memref<1x1x8xf32, #tpu.memory_space<vmem>>, %arg6: memref<1x1x8x8xbf16, #tpu.memory_space<vmem>>) attributes {dimension_semantics = [#tpu.dimension_semantics<parallel>, #tpu.dimension_semantics<parallel>], iteration_bounds = array<i64: 2, 4>, scalar_prefetch = 0 : i64, scratch_operands = 0 : i64, tpu.core_type = #tpu.core_type<tc>, window_params = [{transform_indices = @transform_0, window_bounds = array<i64: 1, 1, 8, 8>}, {transform_indices = @transform_1, window_bounds = array<i64: 1, 1, 8, 8>}, {transform_indices = @transform_2, window_bounds = array<i64: 1, 1, 8, 8>}, {transform_indices = @transform_3, window_bounds = array<i64: 1, 1, 8>}, {transform_indices = @transform_4, window_bounds = array<i64: 1, 1, 8, 8>}]} {
    %c0 = arith.constant 0 : index
    %c0_0 = arith.constant 0 : index
    %c0_1 = arith.constant 0 : index
    %c0_2 = arith.constant 0 : index
    %0 = vector.load %arg2[%c0, %c0_0, %c0_1, %c0_2] : memref<1x1x8x8xbf16, #tpu.memory_space<vmem>>, vector<1x1x8x8xbf16>
    %1 = vector.shape_cast %0 : vector<1x1x8x8xbf16> to vector<8x8xbf16>
    %c0_3 = arith.constant 0 : index
    %c0_4 = arith.constant 0 : index
    %c0_5 = arith.constant 0 : index
    %c0_6 = arith.constant 0 : index
    %2 = vector.load %arg3[%c0_3, %c0_4, %c0_5, %c0_6] : memref<1x1x8x8xbf16, #tpu.memory_space<vmem>>, vector<1x1x8x8xbf16>
    %3 = vector.shape_cast %2 : vector<1x1x8x8xbf16> to vector<8x8xbf16>
    %c0_7 = arith.constant 0 : index
    %c0_8 = arith.constant 0 : index
    %c0_9 = arith.constant 0 : index
    %c0_10 = arith.constant 0 : index
    %4 = vector.load %arg4[%c0_7, %c0_8, %c0_9, %c0_10] : memref<1x1x8x8xbf16, #tpu.memory_space<vmem>>, vector<1x1x8x8xbf16>
    %5 = vector.shape_cast %4 : vector<1x1x8x8xbf16> to vector<8x8xbf16>
    %cst = arith.constant dense<0.000000e+00> : vector<8x8xf32>
    %6 = tpu.matmul %1, %3, %cst {dimension_numbers = #tpu.dot_dimension_numbers<[1], [1], [0], [0], [0, 0, 1, 0], [], []>} : vector<8x8xbf16>, vector<8x8xbf16>, vector<8x8xf32> -> vector<8x8xf32>
    %cst_11 = arith.constant 0.353553385 : f32
    %7 = vector.broadcast %cst_11 : f32 to vector<8x8xf32>
    %8 = arith.mulf %6, %7 : vector<8x8xf32>
    %c0_12 = arith.constant 0 : index
    %c0_13 = arith.constant 0 : index
    %c0_14 = arith.constant 0 : index
    %9 = vector.load %arg5[%c0_12, %c0_13, %c0_14] : memref<1x1x8xf32, #tpu.memory_space<vmem>>, vector<1x1x8xf32>
    %10 = vector.shape_cast %9 : vector<1x1x8xf32> to vector<1x8xf32>
    %11 = vector.broadcast %10 : vector<1x8xf32> to vector<8x8xf32>
    %12 = arith.addf %8, %11 : vector<8x8xf32>
    %cst_15 = arith.constant dense<0xFF800000> : vector<8xf32>
    %13 = vector.multi_reduction <maximumf>, %12, %cst_15 [1] : vector<8x8xf32> to vector<8xf32>
    %14 = vector.shape_cast %13 : vector<8xf32> to vector<8x1xf32>
    %15 = vector.broadcast %14 : vector<8x1xf32> to vector<8x8xf32>
    %16 = arith.subf %12, %15 : vector<8x8xf32>
    %17 = math.exp %16 : vector<8x8xf32>
    %cst_16 = arith.constant dense<0.000000e+00> : vector<8xf32>
    %18 = vector.multi_reduction <add>, %17, %cst_16 [1] : vector<8x8xf32> to vector<8xf32>
    %19 = vector.shape_cast %18 : vector<8xf32> to vector<8x1xf32>
    %20 = tpu.reciprocal %19 {approx = true} : vector<8x1xf32> -> vector<8x1xf32>
    %21 = vector.broadcast %20 : vector<8x1xf32> to vector<8x8xf32>
    %22 = arith.mulf %17, %21 : vector<8x8xf32>
    %23 = arith.truncf %22 : vector<8x8xf32> to vector<8x8xbf16>
    %cst_17 = arith.constant dense<0.000000e+00> : vector<8x8xf32>
    %24 = tpu.matmul %23, %5, %cst_17 {dimension_numbers = #tpu.dot_dimension_numbers<[1], [0], [0], [1], [0, 0, 1, 1], [], []>} : vector<8x8xbf16>, vector<8x8xbf16>, vector<8x8xf32> -> vector<8x8xf32>
    %25 = arith.truncf %24 : vector<8x8xf32> to vector<8x8xbf16>
    %c0_18 = arith.constant 0 : index
    %c0_19 = arith.constant 0 : index
    %c0_20 = arith.constant 0 : index
    %c0_21 = arith.constant 0 : index
    %26 = vector.load %arg6[%c0_18, %c0_19, %c0_20, %c0_21] : memref<1x1x8x8xbf16, #tpu.memory_space<vmem>>, vector<1x1x8x8xbf16>
    %27 = vector.shape_cast %26 : vector<1x1x8x8xbf16> to vector<8x8xbf16>
    %28 = vector.shape_cast %25 : vector<8x8xbf16> to vector<1x1x8x8xbf16>
    tpu.vector_store %arg6[%c0_18, %c0_19, %c0_20, %c0_21], %28 {strides = array<i32>} : memref<1x1x8x8xbf16, #tpu.memory_space<vmem>>, vector<1x1x8x8xbf16>,
    return
  }
  func.func @transform_0(%arg0: i32, %arg1: i32) -> (i32, i32, i32, i32) {
    %c0_i32 = arith.constant 0 : i32
    %c0_i32_0 = arith.constant 0 : i32
    %c0_i32_1 = arith.constant 0 : i32
    return %arg0, %arg1, %c0_i32, %c0_i32_0 : i32, i32, i32, i32
  }
  func.func @transform_1(%arg0: i32, %arg1: i32) -> (i32, i32, i32, i32) {
    %c0_i32 = arith.constant 0 : i32
    %c0_i32_0 = arith.constant 0 : i32
    %c0_i32_1 = arith.constant 0 : i32
    return %arg0, %arg1, %c0_i32, %c0_i32_0 : i32, i32, i32, i32
  }
  func.func @transform_2(%arg0: i32, %arg1: i32) -> (i32, i32, i32, i32) {
    %c0_i32 = arith.constant 0 : i32
    %c0_i32_0 = arith.constant 0 : i32
    %c0_i32_1 = arith.constant 0 : i32
    return %arg0, %arg1, %c0_i32, %c0_i32_0 : i32, i32, i32, i32
  }
  func.func @transform_3(%arg0: i32, %arg1: i32) -> (i32, i32, i32) {
    %c0_i32 = arith.constant 0 : i32
    %c0_i32_0 = arith.constant 0 : i32
    %c0_i32_1 = arith.constant 0 : i32
    return %arg0, %c0_i32, %c0_i32_0 : i32, i32, i32
  }
  func.func @transform_4(%arg0: i32, %arg1: i32) -> (i32, i32, i32, i32) {
    %c0_i32 = arith.constant 0 : i32
    %c0_i32_0 = arith.constant 0 : i32
    %c0_i32_1 = arith.constant 0 : i32
    return %arg0, %arg1, %c0_i32, %c0_i32_0 : i32, i32, i32, i32
  }
}

module attributes {stable_mosaic.version = 11 : i64} {
  func.func @proj_add_ln_kernel(%arg0: i32, %arg1: memref<16x32xbf16, #tpu.memory_space<vmem>>, %arg2: memref<16x32xf32, #tpu.memory_space<vmem>>, %arg3: memref<32x32xbf16, #tpu.memory_space<vmem>>, %arg4: memref<1x32xf32, #tpu.memory_space<vmem>>, %arg5: memref<1x32xf32, #tpu.memory_space<vmem>>, %arg6: memref<1x32xf32, #tpu.memory_space<vmem>>, %arg7: memref<16x32xf32, #tpu.memory_space<vmem>>) attributes {dimension_semantics = [#tpu.dimension_semantics<parallel>], iteration_bounds = array<i64: 1>, scalar_prefetch = 0 : i64, scratch_operands = 0 : i64, tpu.core_type = #tpu.core_type<tc>, window_params = [{transform_indices = @transform_0, window_bounds = array<i64: 16, 32>}, {transform_indices = @transform_1, window_bounds = array<i64: 16, 32>}, {pipeline_mode = #tpu.pipeline_mode<synchronous>, transform_indices = @transform_2, window_bounds = array<i64: 32, 32>}, {pipeline_mode = #tpu.pipeline_mode<synchronous>, transform_indices = @transform_3, window_bounds = array<i64: 1, 32>}, {pipeline_mode = #tpu.pipeline_mode<synchronous>, transform_indices = @transform_4, window_bounds = array<i64: 1, 32>}, {pipeline_mode = #tpu.pipeline_mode<synchronous>, transform_indices = @transform_5, window_bounds = array<i64: 1, 32>}, {transform_indices = @transform_6, window_bounds = array<i64: 16, 32>}]} {
    %c0 = arith.constant 0 : index
    %c0_0 = arith.constant 0 : index
    %0 = vector.load %arg1[%c0, %c0_0] : memref<16x32xbf16, #tpu.memory_space<vmem>>, vector<16x32xbf16>
    %c0_1 = arith.constant 0 : index
    %c0_2 = arith.constant 0 : index
    %1 = vector.load %arg3[%c0_1, %c0_2] : memref<32x32xbf16, #tpu.memory_space<vmem>>, vector<32x32xbf16>
    %cst = arith.constant dense<0.000000e+00> : vector<16x32xf32>
    %2 = tpu.matmul %0, %1, %cst {dimension_numbers = #tpu.dot_dimension_numbers<[1], [0], [0], [1], [0, 0, 1, 1], [], []>} : vector<16x32xbf16>, vector<32x32xbf16>, vector<16x32xf32> -> vector<16x32xf32>
    %c0_3 = arith.constant 0 : index
    %c0_4 = arith.constant 0 : index
    %3 = vector.load %arg4[%c0_3, %c0_4] : memref<1x32xf32, #tpu.memory_space<vmem>>, vector<1x32xf32>
    %4 = vector.broadcast %3 : vector<1x32xf32> to vector<16x32xf32>
    %5 = arith.addf %2, %4 : vector<16x32xf32>
    %c0_5 = arith.constant 0 : index
    %c0_6 = arith.constant 0 : index
    %6 = vector.load %arg2[%c0_5, %c0_6] : memref<16x32xf32, #tpu.memory_space<vmem>>, vector<16x32xf32>
    %7 = arith.addf %5, %6 : vector<16x32xf32>
    %c0_7 = arith.constant 0 : index
    %c0_8 = arith.constant 0 : index
    %8 = vector.load %arg5[%c0_7, %c0_8] : memref<1x32xf32, #tpu.memory_space<vmem>>, vector<1x32xf32>
    %c0_9 = arith.constant 0 : index
    %c0_10 = arith.constant 0 : index
    %9 = vector.load %arg6[%c0_9, %c0_10] : memref<1x32xf32, #tpu.memory_space<vmem>>, vector<1x32xf32>
    %cst_11 = arith.constant dense<0.000000e+00> : vector<16xf32>
    %10 = vector.multi_reduction <add>, %7, %cst_11 [1] : vector<16x32xf32> to vector<16xf32>
    %11 = vector.shape_cast %10 : vector<16xf32> to vector<16x1xf32>
    %cst_12 = arith.constant 3.200000e+01 : f32
    %12 = vector.broadcast %cst_12 : f32 to vector<16x1xf32>
    %13 = arith.divf %11, %12 : vector<16x1xf32>
    %14 = vector.broadcast %13 : vector<16x1xf32> to vector<16x32xf32>
    %15 = arith.subf %7, %14 : vector<16x32xf32>
    %16 = arith.mulf %15, %15 : vector<16x32xf32>
    %cst_13 = arith.constant dense<0.000000e+00> : vector<16xf32>
    %17 = vector.multi_reduction <add>, %16, %cst_13 [1] : vector<16x32xf32> to vector<16xf32>
    %18 = vector.shape_cast %17 : vector<16xf32> to vector<16x1xf32>
    %cst_14 = arith.constant 3.200000e+01 : f32
    %19 = vector.broadcast %cst_14 : f32 to vector<16x1xf32>
    %20 = arith.divf %18, %19 : vector<16x1xf32>
    %cst_15 = arith.constant 9.99999996E-13 : f32
    %21 = vector.broadcast %cst_15 : f32 to vector<16x1xf32>
    %22 = arith.addf %20, %21 : vector<16x1xf32>
    %23 = math.rsqrt %22 : vector<16x1xf32>
    %24 = vector.broadcast %23 : vector<16x1xf32> to vector<16x32xf32>
    %25 = arith.mulf %15, %24 : vector<16x32xf32>
    %26 = vector.broadcast %8 : vector<1x32xf32> to vector<16x32xf32>
    %27 = arith.mulf %25, %26 : vector<16x32xf32>
    %28 = vector.broadcast %9 : vector<1x32xf32> to vector<16x32xf32>
    %29 = arith.addf %27, %28 : vector<16x32xf32>
    %c0_16 = arith.constant 0 : index
    %c0_17 = arith.constant 0 : index
    %30 = vector.load %arg7[%c0_16, %c0_17] : memref<16x32xf32, #tpu.memory_space<vmem>>, vector<16x32xf32>
    tpu.vector_store %arg7[%c0_16, %c0_17], %29 {strides = array<i32>} : memref<16x32xf32, #tpu.memory_space<vmem>>, vector<16x32xf32>,
    return
  }
  func.func @transform_0(%arg0: i32) -> (i32, i32) {
    %c0_i32 = arith.constant 0 : i32
    %c0_i32_0 = arith.constant 0 : i32
    return %arg0, %c0_i32 : i32, i32
  }
  func.func @transform_1(%arg0: i32) -> (i32, i32) {
    %c0_i32 = arith.constant 0 : i32
    %c0_i32_0 = arith.constant 0 : i32
    return %arg0, %c0_i32 : i32, i32
  }
  func.func @transform_2(%arg0: i32) -> (i32, i32) {
    %c0_i32 = arith.constant 0 : i32
    %c0_i32_0 = arith.constant 0 : i32
    %c0_i32_1 = arith.constant 0 : i32
    return %c0_i32, %c0_i32_0 : i32, i32
  }
  func.func @transform_3(%arg0: i32) -> (i32, i32) {
    %c0_i32 = arith.constant 0 : i32
    %c0_i32_0 = arith.constant 0 : i32
    %c0_i32_1 = arith.constant 0 : i32
    return %c0_i32, %c0_i32_0 : i32, i32
  }
  func.func @transform_4(%arg0: i32) -> (i32, i32) {
    %c0_i32 = arith.constant 0 : i32
    %c0_i32_0 = arith.constant 0 : i32
    %c0_i32_1 = arith.constant 0 : i32
    return %c0_i32, %c0_i32_0 : i32, i32
  }
  func.func @transform_5(%arg0: i32) -> (i32, i32) {
    %c0_i32 = arith.constant 0 : i32
    %c0_i32_0 = arith.constant 0 : i32
    %c0_i32_1 = arith.constant 0 : i32
    return %c0_i32, %c0_i32_0 : i32, i32
  }
  func.func @transform_6(%arg0: i32) -> (i32, i32) {
    %c0_i32 = arith.constant 0 : i32
    %c0_i32_0 = arith.constant 0 : i32
    return %arg0, %c0_i32 : i32, i32
  }
}

module attributes {stable_mosaic.version = 11 : i64} {
  func.func @ffn_add_ln_kernel(%arg0: i32, %arg1: memref<16x32xf32, #tpu.memory_space<vmem>>, %arg2: memref<32x128xbf16, #tpu.memory_space<vmem>>, %arg3: memref<1x128xf32, #tpu.memory_space<vmem>>, %arg4: memref<128x32xbf16, #tpu.memory_space<vmem>>, %arg5: memref<1x32xf32, #tpu.memory_space<vmem>>, %arg6: memref<1x32xf32, #tpu.memory_space<vmem>>, %arg7: memref<1x32xf32, #tpu.memory_space<vmem>>, %arg8: memref<16x32xf32, #tpu.memory_space<vmem>>) attributes {dimension_semantics = [#tpu.dimension_semantics<parallel>], iteration_bounds = array<i64: 1>, scalar_prefetch = 0 : i64, scratch_operands = 0 : i64, tpu.core_type = #tpu.core_type<tc>, window_params = [{transform_indices = @transform_0, window_bounds = array<i64: 16, 32>}, {pipeline_mode = #tpu.pipeline_mode<synchronous>, transform_indices = @transform_1, window_bounds = array<i64: 32, 128>}, {pipeline_mode = #tpu.pipeline_mode<synchronous>, transform_indices = @transform_2, window_bounds = array<i64: 1, 128>}, {pipeline_mode = #tpu.pipeline_mode<synchronous>, transform_indices = @transform_3, window_bounds = array<i64: 128, 32>}, {pipeline_mode = #tpu.pipeline_mode<synchronous>, transform_indices = @transform_4, window_bounds = array<i64: 1, 32>}, {pipeline_mode = #tpu.pipeline_mode<synchronous>, transform_indices = @transform_5, window_bounds = array<i64: 1, 32>}, {pipeline_mode = #tpu.pipeline_mode<synchronous>, transform_indices = @transform_6, window_bounds = array<i64: 1, 32>}, {transform_indices = @transform_7, window_bounds = array<i64: 16, 32>}]} {
    %c0 = arith.constant 0 : index
    %c0_0 = arith.constant 0 : index
    %0 = vector.load %arg1[%c0, %c0_0] : memref<16x32xf32, #tpu.memory_space<vmem>>, vector<16x32xf32>
    %1 = arith.truncf %0 : vector<16x32xf32> to vector<16x32xbf16>
    %c0_1 = arith.constant 0 : index
    %c0_2 = arith.constant 0 : index
    %2 = vector.load %arg2[%c0_1, %c0_2] : memref<32x128xbf16, #tpu.memory_space<vmem>>, vector<32x128xbf16>
    %cst = arith.constant dense<0.000000e+00> : vector<16x128xf32>
    %3 = tpu.matmul %1, %2, %cst {dimension_numbers = #tpu.dot_dimension_numbers<[1], [0], [0], [1], [0, 0, 1, 1], [], []>} : vector<16x32xbf16>, vector<32x128xbf16>, vector<16x128xf32> -> vector<16x128xf32>
    %c0_3 = arith.constant 0 : index
    %c0_4 = arith.constant 0 : index
    %4 = vector.load %arg3[%c0_3, %c0_4] : memref<1x128xf32, #tpu.memory_space<vmem>>, vector<1x128xf32>
    %5 = vector.broadcast %4 : vector<1x128xf32> to vector<16x128xf32>
    %6 = arith.addf %3, %5 : vector<16x128xf32>
    %7 = arith.mulf %6, %6 : vector<16x128xf32>
    %8 = arith.mulf %6, %7 : vector<16x128xf32>
    %cst_5 = arith.constant 4.471500e-02 : f32
    %9 = vector.broadcast %cst_5 : f32 to vector<16x128xf32>
    %10 = arith.mulf %9, %8 : vector<16x128xf32>
    %11 = arith.addf %6, %10 : vector<16x128xf32>
    %cst_6 = arith.constant 0.797884583 : f32
    %12 = vector.broadcast %cst_6 : f32 to vector<16x128xf32>
    %13 = arith.mulf %12, %11 : vector<16x128xf32>
    %14 = math.tanh %13 : vector<16x128xf32>
    %cst_7 = arith.constant 1.000000e+00 : f32
    %15 = vector.broadcast %cst_7 : f32 to vector<16x128xf32>
    %16 = arith.addf %15, %14 : vector<16x128xf32>
    %cst_8 = arith.constant 5.000000e-01 : f32
    %17 = vector.broadcast %cst_8 : f32 to vector<16x128xf32>
    %18 = arith.mulf %17, %16 : vector<16x128xf32>
    %19 = arith.mulf %6, %18 : vector<16x128xf32>
    %20 = arith.truncf %19 : vector<16x128xf32> to vector<16x128xbf16>
    %c0_9 = arith.constant 0 : index
    %c0_10 = arith.constant 0 : index
    %21 = vector.load %arg4[%c0_9, %c0_10] : memref<128x32xbf16, #tpu.memory_space<vmem>>, vector<128x32xbf16>
    %cst_11 = arith.constant dense<0.000000e+00> : vector<16x32xf32>
    %22 = tpu.matmul %20, %21, %cst_11 {dimension_numbers = #tpu.dot_dimension_numbers<[1], [0], [0], [1], [0, 0, 1, 1], [], []>} : vector<16x128xbf16>, vector<128x32xbf16>, vector<16x32xf32> -> vector<16x32xf32>
    %c0_12 = arith.constant 0 : index
    %c0_13 = arith.constant 0 : index
    %23 = vector.load %arg5[%c0_12, %c0_13] : memref<1x32xf32, #tpu.memory_space<vmem>>, vector<1x32xf32>
    %24 = vector.broadcast %23 : vector<1x32xf32> to vector<16x32xf32>
    %25 = arith.addf %22, %24 : vector<16x32xf32>
    %26 = arith.addf %25, %0 : vector<16x32xf32>
    %c0_14 = arith.constant 0 : index
    %c0_15 = arith.constant 0 : index
    %27 = vector.load %arg6[%c0_14, %c0_15] : memref<1x32xf32, #tpu.memory_space<vmem>>, vector<1x32xf32>
    %c0_16 = arith.constant 0 : index
    %c0_17 = arith.constant 0 : index
    %28 = vector.load %arg7[%c0_16, %c0_17] : memref<1x32xf32, #tpu.memory_space<vmem>>, vector<1x32xf32>
    %cst_18 = arith.constant dense<0.000000e+00> : vector<16xf32>
    %29 = vector.multi_reduction <add>, %26, %cst_18 [1] : vector<16x32xf32> to vector<16xf32>
    %30 = vector.shape_cast %29 : vector<16xf32> to vector<16x1xf32>
    %cst_19 = arith.constant 3.200000e+01 : f32
    %31 = vector.broadcast %cst_19 : f32 to vector<16x1xf32>
    %32 = arith.divf %30, %31 : vector<16x1xf32>
    %33 = vector.broadcast %32 : vector<16x1xf32> to vector<16x32xf32>
    %34 = arith.subf %26, %33 : vector<16x32xf32>
    %35 = arith.mulf %34, %34 : vector<16x32xf32>
    %cst_20 = arith.constant dense<0.000000e+00> : vector<16xf32>
    %36 = vector.multi_reduction <add>, %35, %cst_20 [1] : vector<16x32xf32> to vector<16xf32>
    %37 = vector.shape_cast %36 : vector<16xf32> to vector<16x1xf32>
    %cst_21 = arith.constant 3.200000e+01 : f32
    %38 = vector.broadcast %cst_21 : f32 to vector<16x1xf32>
    %39 = arith.divf %37, %38 : vector<16x1xf32>
    %cst_22 = arith.constant 9.99999996E-13 : f32
    %40 = vector.broadcast %cst_22 : f32 to vector<16x1xf32>
    %41 = arith.addf %39, %40 : vector<16x1xf32>
    %42 = math.rsqrt %41 : vector<16x1xf32>
    %43 = vector.broadcast %42 : vector<16x1xf32> to vector<16x32xf32>
    %44 = arith.mulf %34, %43 : vector<16x32xf32>
    %45 = vector.broadcast %27 : vector<1x32xf32> to vector<16x32xf32>
    %46 = arith.mulf %44, %45 : vector<16x32xf32>
    %47 = vector.broadcast %28 : vector<1x32xf32> to vector<16x32xf32>
    %48 = arith.addf %46, %47 : vector<16x32xf32>
    %c0_23 = arith.constant 0 : index
    %c0_24 = arith.constant 0 : index
    %49 = vector.load %arg8[%c0_23, %c0_24] : memref<16x32xf32, #tpu.memory_space<vmem>>, vector<16x32xf32>
    tpu.vector_store %arg8[%c0_23, %c0_24], %48 {strides = array<i32>} : memref<16x32xf32, #tpu.memory_space<vmem>>, vector<16x32xf32>,
    return
  }
  func.func @transform_0(%arg0: i32) -> (i32, i32) {
    %c0_i32 = arith.constant 0 : i32
    %c0_i32_0 = arith.constant 0 : i32
    return %arg0, %c0_i32 : i32, i32
  }
  func.func @transform_1(%arg0: i32) -> (i32, i32) {
    %c0_i32 = arith.constant 0 : i32
    %c0_i32_0 = arith.constant 0 : i32
    %c0_i32_1 = arith.constant 0 : i32
    return %c0_i32, %c0_i32_0 : i32, i32
  }
  func.func @transform_2(%arg0: i32) -> (i32, i32) {
    %c0_i32 = arith.constant 0 : i32
    %c0_i32_0 = arith.constant 0 : i32
    %c0_i32_1 = arith.constant 0 : i32
    return %c0_i32, %c0_i32_0 : i32, i32
  }
  func.func @transform_3(%arg0: i32) -> (i32, i32) {
    %c0_i32 = arith.constant 0 : i32
    %c0_i32_0 = arith.constant 0 : i32
    %c0_i32_1 = arith.constant 0 : i32
    return %c0_i32, %c0_i32_0 : i32, i32
  }
  func.func @transform_4(%arg0: i32) -> (i32, i32) {
    %c0_i32 = arith.constant 0 : i32
    %c0_i32_0 = arith.constant 0 : i32
    %c0_i32_1 = arith.constant 0 : i32
    return %c0_i32, %c0_i32_0 : i32, i32
  }
  func.func @transform_5(%arg0: i32) -> (i32, i32) {
    %c0_i32 = arith.constant 0 : i32
    %c0_i32_0 = arith.constant 0 : i32
    %c0_i32_1 = arith.constant 0 : i32
    return %c0_i32, %c0_i32_0 : i32, i32
  }
  func.func @transform_6(%arg0: i32) -> (i32, i32) {
    %c0_i32 = arith.constant 0 : i32
    %c0_i32_0 = arith.constant 0 : i32
    %c0_i32_1 = arith.constant 0 : i32
    return %c0_i32, %c0_i32_0 : i32, i32
  }
  func.func @transform_7(%arg0: i32) -> (i32, i32) {
    %c0_i32 = arith.constant 0 : i32
    %c0_i32_0 = arith.constant 0 : i32
    return %arg0, %c0_i32 : i32, i32
  }
}

module attributes {stable_mosaic.version = 11 : i64} {
  func.func @ffn_add_ln_kernel(%arg0: i32, %arg1: memref<16x32xf32, #tpu.memory_space<vmem>>, %arg2: memref<32x128xbf16, #tpu.memory_space<vmem>>, %arg3: memref<1x128xf32, #tpu.memory_space<vmem>>, %arg4: memref<128x32xbf16, #tpu.memory_space<vmem>>, %arg5: memref<1x32xf32, #tpu.memory_space<vmem>>, %arg6: memref<1x32xf32, #tpu.memory_space<vmem>>, %arg7: memref<1x32xf32, #tpu.memory_space<vmem>>, %arg8: memref<16x32xf32, #tpu.memory_space<vmem>>) attributes {dimension_semantics = [#tpu.dimension_semantics<parallel>], iteration_bounds = array<i64: 1>, scalar_prefetch = 0 : i64, scratch_operands = 0 : i64, tpu.core_type = #tpu.core_type<tc>, window_params = [{transform_indices = @transform_0, window_bounds = array<i64: 16, 32>}, {pipeline_mode = #tpu.pipeline_mode<synchronous>, transform_indices = @transform_1, window_bounds = array<i64: 32, 128>}, {pipeline_mode = #tpu.pipeline_mode<synchronous>, transform_indices = @transform_2, window_bounds = array<i64: 1, 128>}, {pipeline_mode = #tpu.pipeline_mode<synchronous>, transform_indices = @transform_3, window_bounds = array<i64: 128, 32>}, {pipeline_mode = #tpu.pipeline_mode<synchronous>, transform_indices = @transform_4, window_bounds = array<i64: 1, 32>}, {pipeline_mode = #tpu.pipeline_mode<synchronous>, transform_indices = @transform_5, window_bounds = array<i64: 1, 32>}, {pipeline_mode = #tpu.pipeline_mode<synchronous>, transform_indices = @transform_6, window_bounds = array<i64: 1, 32>}, {transform_indices = @transform_7, window_bounds = array<i64: 16, 32>}]} {
    %c0 = arith.constant 0 : index
    %c0_0 = arith.constant 0 : index
    %0 = vector.load %arg1[%c0, %c0_0] : memref<16x32xf32, #tpu.memory_space<vmem>>, vector<16x32xf32>
    %1 = arith.truncf %0 : vector<16x32xf32> to vector<16x32xbf16>
    %c0_1 = arith.constant 0 : index
    %c0_2 = arith.constant 0 : index
    %2 = vector.load %arg2[%c0_1, %c0_2] : memref<32x128xbf16, #tpu.memory_space<vmem>>, vector<32x128xbf16>
    %cst = arith.constant dense<0.000000e+00> : vector<16x128xf32>
    %3 = tpu.matmul %1, %2, %cst {dimension_numbers = #tpu.dot_dimension_numbers<[1], [0], [0], [1], [0, 0, 1, 1], [], []>} : vector<16x32xbf16>, vector<32x128xbf16>, vector<16x128xf32> -> vector<16x128xf32>
    %c0_3 = arith.constant 0 : index
    %c0_4 = arith.constant 0 : index
    %4 = vector.load %arg3[%c0_3, %c0_4] : memref<1x128xf32, #tpu.memory_space<vmem>>, vector<1x128xf32>
    %5 = vector.broadcast %4 : vector<1x128xf32> to vector<16x128xf32>
    %6 = arith.addf %3, %5 : vector<16x128xf32>
    %7 = arith.mulf %6, %6 : vector<16x128xf32>
    %8 = arith.mulf %6, %7 : vector<16x128xf32>
    %cst_5 = arith.constant 4.471500e-02 : f32
    %9 = vector.broadcast %cst_5 : f32 to vector<16x128xf32>
    %10 = arith.mulf %9, %8 : vector<16x128xf32>
    %11 = arith.addf %6, %10 : vector<16x128xf32>
    %cst_6 = arith.constant 0.797884583 : f32
    %12 = vector.broadcast %cst_6 : f32 to vector<16x128xf32>
    %13 = arith.mulf %12, %11 : vector<16x128xf32>
    %14 = math.tanh %13 : vector<16x128xf32>
    %cst_7 = arith.constant 1.000000e+00 : f32
    %15 = vector.broadcast %cst_7 : f32 to vector<16x128xf32>
    %16 = arith.addf %15, %14 : vector<16x128xf32>
    %cst_8 = arith.constant 5.000000e-01 : f32
    %17 = vector.broadcast %cst_8 : f32 to vector<16x128xf32>
    %18 = arith.mulf %17, %16 : vector<16x128xf32>
    %19 = arith.mulf %6, %18 : vector<16x128xf32>
    %20 = arith.truncf %19 : vector<16x128xf32> to vector<16x128xbf16>
    %c0_9 = arith.constant 0 : index
    %c0_10 = arith.constant 0 : index
    %21 = vector.load %arg4[%c0_9, %c0_10] : memref<128x32xbf16, #tpu.memory_space<vmem>>, vector<128x32xbf16>
    %cst_11 = arith.constant dense<0.000000e+00> : vector<16x32xf32>
    %22 = tpu.matmul %20, %21, %cst_11 {dimension_numbers = #tpu.dot_dimension_numbers<[1], [0], [0], [1], [0, 0, 1, 1], [], []>} : vector<16x128xbf16>, vector<128x32xbf16>, vector<16x32xf32> -> vector<16x32xf32>
    %c0_12 = arith.constant 0 : index
    %c0_13 = arith.constant 0 : index
    %23 = vector.load %arg5[%c0_12, %c0_13] : memref<1x32xf32, #tpu.memory_space<vmem>>, vector<1x32xf32>
    %24 = vector.broadcast %23 : vector<1x32xf32> to vector<16x32xf32>
    %25 = arith.addf %22, %24 : vector<16x32xf32>
    %26 = arith.addf %25, %0 : vector<16x32xf32>
    %c0_14 = arith.constant 0 : index
    %c0_15 = arith.constant 0 : index
    %27 = vector.load %arg6[%c0_14, %c0_15] : memref<1x32xf32, #tpu.memory_space<vmem>>, vector<1x32xf32>
    %c0_16 = arith.constant 0 : index
    %c0_17 = arith.constant 0 : index
    %28 = vector.load %arg7[%c0_16, %c0_17] : memref<1x32xf32, #tpu.memory_space<vmem>>, vector<1x32xf32>
    %cst_18 = arith.constant dense<0.000000e+00> : vector<16xf32>
    %29 = vector.multi_reduction <add>, %26, %cst_18 [1] : vector<16x32xf32> to vector<16xf32>
    %30 = vector.shape_cast %29 : vector<16xf32> to vector<16x1xf32>
    %cst_19 = arith.constant 3.200000e+01 : f32
    %31 = vector.broadcast %cst_19 : f32 to vector<16x1xf32>
    %32 = arith.divf %30, %31 : vector<16x1xf32>
    %33 = vector.broadcast %32 : vector<16x1xf32> to vector<16x32xf32>
    %34 = arith.subf %26, %33 : vector<16x32xf32>
    %35 = arith.mulf %34, %34 : vector<16x32xf32>
    %cst_20 = arith.constant dense<0.000000e+00> : vector<16xf32>
    %36 = vector.multi_reduction <add>, %35, %cst_20 [1] : vector<16x32xf32> to vector<16xf32>
    %37 = vector.shape_cast %36 : vector<16xf32> to vector<16x1xf32>
    %cst_21 = arith.constant 3.200000e+01 : f32
    %38 = vector.broadcast %cst_21 : f32 to vector<16x1xf32>
    %39 = arith.divf %37, %38 : vector<16x1xf32>
    %cst_22 = arith.constant 9.99999996E-13 : f32
    %40 = vector.broadcast %cst_22 : f32 to vector<16x1xf32>
    %41 = arith.addf %39, %40 : vector<16x1xf32>
    %42 = math.rsqrt %41 : vector<16x1xf32>
    %43 = vector.broadcast %42 : vector<16x1xf32> to vector<16x32xf32>
    %44 = arith.mulf %34, %43 : vector<16x32xf32>
    %45 = vector.broadcast %27 : vector<1x32xf32> to vector<16x32xf32>
    %46 = arith.mulf %44, %45 : vector<16x32xf32>
    %47 = vector.broadcast %28 : vector<1x32xf32> to vector<16x32xf32>
    %48 = arith.addf %46, %47 : vector<16x32xf32>
    %c0_23 = arith.constant 0 : index
    %c0_24 = arith.constant 0 : index
    %49 = vector.load %arg8[%c0_23, %c0_24] : memref<16x32xf32, #tpu.memory_space<vmem>>, vector<16x32xf32>
    tpu.vector_store %arg8[%c0_23, %c0_24], %48 {strides = array<i32>} : memref<16x32xf32, #tpu.memory_space<vmem>>, vector<16x32xf32>,
    return
  }
  func.func @transform_0(%arg0: i32) -> (i32, i32) {
    %c0_i32 = arith.constant 0 : i32
    %c0_i32_0 = arith.constant 0 : i32
    return %arg0, %c0_i32 : i32, i32
  }
  func.func @transform_1(%arg0: i32) -> (i32, i32) {
    %c0_i32 = arith.constant 0 : i32
    %c0_i32_0 = arith.constant 0 : i32
    %c0_i32_1 = arith.constant 0 : i32
    return %c0_i32, %c0_i32_0 : i32, i32
  }
  func.func @transform_2(%arg0: i32) -> (i32, i32) {
    %c0_i32 = arith.constant 0 : i32
    %c0_i32_0 = arith.constant 0 : i32
    %c0_i32_1 = arith.constant 0 : i32
    return %c0_i32, %c0_i32_0 : i32, i32
  }
  func.func @transform_3(%arg0: i32) -> (i32, i32) {
    %c0_i32 = arith.constant 0 : i32
    %c0_i32_0 = arith.constant 0 : i32
    %c0_i32_1 = arith.constant 0 : i32
    return %c0_i32, %c0_i32_0 : i32, i32
  }
  func.func @transform_4(%arg0: i32) -> (i32, i32) {
    %c0_i32 = arith.constant 0 : i32
    %c0_i32_0 = arith.constant 0 : i32
    %c0_i32_1 = arith.constant 0 : i32
    return %c0_i32, %c0_i32_0 : i32, i32
  }
  func.func @transform_5(%arg0: i32) -> (i32, i32) {
    %c0_i32 = arith.constant 0 : i32
    %c0_i32_0 = arith.constant 0 : i32
    %c0_i32_1 = arith.constant 0 : i32
    return %c0_i32, %c0_i32_0 : i32, i32
  }
  func.func @transform_6(%arg0: i32) -> (i32, i32) {
    %c0_i32 = arith.constant 0 : i32
    %c0_i32_0 = arith.constant 0 : i32
    %c0_i32_1 = arith.constant 0 : i32
    return %c0_i32, %c0_i32_0 : i32, i32
  }
  func.func @transform_7(%arg0: i32) -> (i32, i32) {
    %c0_i32 = arith.constant 0 : i32
    %c0_i32_0 = arith.constant 0 : i32
    return %arg0, %c0_i32 : i32, i32
  }
}

</mosaic_0001>

<llo_original>
// kernel: bert_forward.9
$region0: #{bert_forward.9}
  #allocation0 [shape = 'u32[]', space=smem, size = 0x4, offset = 0x4, fixed_abs, tag = 'smem constant byte address 0x4 - core index']
  #allocation1 [shape = 'u32[72,128]{1,0:T(1,128)}', space=vmem, size = 0x9000, scoped, tag = 'internal scratch']
  %s0 = inlined_call_operand.vmem [shape: f32[16,32], index: 0, kind: input, shape index: {}]
  %s1 = inlined_call_operand.vmem [shape: f32[16,32], index: 1, kind: input, shape index: {}]
  %s2 = inlined_call_operand.vmem [shape: f32[16,32], index: 2, kind: input, shape index: {}]
  %s3 = inlined_call_operand.vmem [shape: f32[1,32], index: 3, kind: input, shape index: {}]
  %s4 = inlined_call_operand.vmem [shape: f32[1,32], index: 4, kind: input, shape index: {}]
  %s5 = inlined_call_operand.vmem [shape: f32[16,32], index: 5, kind: output, shape index: {}]
  %s6 = sld [smem:[#allocation0]]
  $region30: #{bert_forward.9} parent=0
    _
  %s8 = ssub.s32 1, %s6
  %s9 = scalar_select 0, %s8, %s6
  // Predicated region
  $region2: #{bert_forward.9} parent=0 // pred_check
    _
  $region3: #{bert_forward.9} parent=0 // pred_check_branch
    %11 = sbr.rel (0) target = $region5
  $region4: #{bert_forward.9} parent=0 // pred_region
    _
  $region5: #{bert_forward.9} parent=0 // pred_fallthru
    _
  // Predicated region
  $region6: #{bert_forward.9} parent=0 // pred_check
    _
  $region7: #{bert_forward.9} parent=0 // pred_check_branch
    %13 = sbr.rel (0) target = $region9
  $region8: #{bert_forward.9} parent=0 // pred_region
    _
  $region9: #{bert_forward.9} parent=0 // pred_fallthru
    _
  // Predicated region
  $region10: #{bert_forward.9} parent=0 // pred_check
    _
  $region11: #{bert_forward.9} parent=0 // pred_check_branch
    %15 = sbr.rel (0) target = $region13
  $region12: #{bert_forward.9} parent=0 // pred_region
    _
  $region13: #{bert_forward.9} parent=0 // pred_fallthru
    _
  // Predicated region
  $region14: #{bert_forward.9} parent=0 // pred_check
    _
  $region15: #{bert_forward.9} parent=0 // pred_check_branch
    %17 = sbr.rel (0) target = $region17
  $region16: #{bert_forward.9} parent=0 // pred_region
    _
  $region17: #{bert_forward.9} parent=0 // pred_fallthru
    _
  // Predicated region
  $region18: #{bert_forward.9} parent=0 // pred_check
    _
  $region19: #{bert_forward.9} parent=0 // pred_check_branch
    %19 = sbr.rel (0) target = $region21
  $region20: #{bert_forward.9} parent=0 // pred_region
    _
  $region21: #{bert_forward.9} parent=0 // pred_fallthru
    _
  %v20 = vld [vmem:[%s0] sm:$0xff]
  %v21 = vld [vmem:[%s0 + $0x8] sm:$0xff]
  %v22 = vld [vmem:[%s1] sm:$0xff]
  %v23 = vld [vmem:[%s1 + $0x8] sm:$0xff]
  %v24 = vadd.f32 %v20, %v22
  %v25 = vadd.f32 %v21, %v23
  %v26 = vld [vmem:[%s2] sm:$0xff]
  %v27 = vld [vmem:[%s2 + $0x8] sm:$0xff]
  %v28 = vadd.f32 %v24, %v26
  %v29 = vadd.f32 %v25, %v27
  %v30 = vld [vmem:[%s3] sm:$0x1]
  %v31 = vld [vmem:[%s4] sm:$0x1]
  %vm32 = vcmask 261120
  %v33 = vsel %vm32, %v28, 0.0
  %34 = vadd.xlane.f32.xlu0 %v33
  %v35 = vpop.xlane.xlu0 %34
  %v36 = vsel %vm32, %v29, 0.0
  %37 = vadd.xlane.f32.xlu0 %v36
  %v38 = vpop.xlane.xlu0 %37
  %v39 = vrcp.pop 32.0
  %v40 = vmul.f32 32.0, %v39
  %v41 = vsub.f32 1.0, %v40
  %v42 = vmul.f32 %v39, %v41
  %v43 = vadd.f32 %v39, %v42
  %vm44 = vweird.f32 %v39
  %v45 = vsel %vm44, %v39, %v43
  %v46 = vmul.f32 %v35, %v45
  %v47 = vmul.f32 %v38, %v45
  %v48 = vsub.f32 %v28, %v46
  %v49 = vsub.f32 %v29, %v47
  %v50 = vmul.f32 %v48, %v48
  %v51 = vmul.f32 %v49, %v49
  %v52 = vsel %vm32, %v50, 0.0
  %53 = vadd.xlane.f32.xlu0 %v52
  %v54 = vpop.xlane.xlu0 %53
  %v55 = vsel %vm32, %v51, 0.0
  %56 = vadd.xlane.f32.xlu0 %v55
  %v57 = vpop.xlane.xlu0 %56
  %v58 = vmul.f32 %v54, %v45
  %v59 = vmul.f32 %v57, %v45
  %v60 = vadd.f32 %v58, 1e-12
  %v61 = vadd.f32 %v59, 1e-12
  %v62 = vrsqrt.pop %v60
  %v63 = vmul.f32 %v62, %v60
  %v64 = vmul.f32 %v63, %v62
  %v65 = vmul.f32 0.5, %v64
  %v66 = vsub.f32 1.5, %v65
  %v67 = vmul.f32 %v62, %v66
  %vm68 = vweird.f32 %v60
  %vm69 = vweird.f32 %v62
  %vm70 = vmor %vm68, %vm69
  %v71 = vsel %vm70, %v62, %v67
  %v72 = vrsqrt.pop %v61
  %v73 = vmul.f32 %v72, %v61
  %v74 = vmul.f32 %v73, %v72
  %v75 = vmul.f32 0.5, %v74
  %v76 = vsub.f32 1.5, %v75
  %v77 = vmul.f32 %v72, %v76
  %vm78 = vweird.f32 %v61
  %vm79 = vweird.f32 %v72
  %vm80 = vmor %vm78, %vm79
  %v81 = vsel %vm80, %v72, %v77
  %v82 = vmul.f32 %v48, %v71
  %v83 = vmul.f32 %v49, %v81
  %v85 = vperm.slane %v30, 0
  %v87 = vmul.f32 %v82, %v85
  %v88 = vmul.f32 %v83, %v85
  %v90 = vperm.slane %v31, 0
  %v92 = vadd.f32 %v87, %v90
  %v93 = vadd.f32 %v88, %v90
  %94 = vst.msk [vmem:[%s5] sm:$0xff] %vm32, %v92
  %95 = vst.msk [vmem:[%s5 + $0x8] sm:$0xff] %vm32, %v93
  // Predicated region
  $region22: #{bert_forward.9} parent=0 // pred_check
    _
  $region23: #{bert_forward.9} parent=0 // pred_check_branch
    %97 = sbr.rel (0) target = $region25
  $region24: #{bert_forward.9} parent=0 // pred_region
    _
  $region25: #{bert_forward.9} parent=0 // pred_fallthru
    _
  // Predicated region
  $region26: #{bert_forward.9} parent=0 // pred_check
    _
  $region27: #{bert_forward.9} parent=0 // pred_check_branch
    %99 = sbr.rel (0) target = $region29
  $region28: #{bert_forward.9} parent=0 // pred_region
    _
  $region29: #{bert_forward.9} parent=0 // pred_fallthru
    _

// kernel: bert_forward.11
$region0: #{bert_forward.11}
  #allocation0 [shape = 'u32[]', space=smem, size = 0x4, offset = 0x4, fixed_abs, tag = 'smem constant byte address 0x4 - core index']
  #allocation1 [shape = 'u32[72,128]{1,0:T(1,128)}', space=vmem, size = 0x9000, scoped, tag = 'internal scratch']
  %s0 = inlined_call_operand.vmem [shape: bf16[2,4,8,8], index: 0, kind: input, shape index: {}]
  %s1 = inlined_call_operand.vmem [shape: bf16[2,4,8,8], index: 1, kind: input, shape index: {}]
  %s2 = inlined_call_operand.vmem [shape: bf16[2,4,8,8], index: 2, kind: input, shape index: {}]
  %s3 = inlined_call_operand.vmem [shape: f32[2,1,8], index: 3, kind: input, shape index: {}]
  %s4 = inlined_call_operand.vmem [shape: bf16[2,4,8,8], index: 4, kind: output, shape index: {}]
  %s5 = sld [smem:[#allocation0]]
  $region49: #{bert_forward.11} parent=0
    _
  %s7 = ssub.s32 1, %s5
  %s8 = scalar_select 0, %s7, %s5
  loop: start=0, step=1, limit=10
  $region2: #{bert_forward.11} parent=0 // loop_pre_header
    _
  $region3: #{bert_forward.11} parent=0 // loop_header
    %s10 = sphi 0, %s14
    %p11 = scmp.ge.s32.totalorder %s10, 10
    %s17 = sphi 0, %s29
    %s18 = sphi 0, %s25
    %s19 = sphi 0, %s17
    %s20 = sphi 0, %s18
    %s21 = sphi 0, %s19
    %s22 = sphi 0, %s20
    %s34 = sphi 0, %s36
    %s37 = sphi 0, %s34
    %s38 = sphi 0, %s37
    %s54 = sphi 0, %s38
    %s62 = sphi 0, %s64
    %s65 = sphi 0, %s62
    %s66 = sphi 0, %s65
    %s82 = sphi 0, %s66
    %s90 = sphi 0, %s92
    %s93 = sphi 0, %s90
    %s94 = sphi 0, %s93
    %s110 = sphi 0, %s94
    %s116 = sphi 0, %s118
    %s119 = sphi 0, %s116
    %s120 = sphi 0, %s119
    %s136 = sphi 0, %s120
    %s144 = sphi 0, %s146
    %s147 = sphi 0, %s144
    %s148 = sphi 0, %s147
    %s164 = sphi 0, %s148
  $region4: #{bert_forward.11} parent=0 // loop_header_branch
    %13 = sbr.rel (%p11) target = $region8
  $region5: #{bert_forward.11} parent=0 // loop_body
    %s15 = ssub.s32 %s10, 1
    %s16 = ssub.s32 %s10, 2
    %s23 = sadd.s32 1, %s18
    %p24 = scmp.ge.s32.totalorder %s23, 4
    %s25 = scalar_select %p24, 0, %s23
    %s26 = sadd.s32 1, %s17
    %s27 = scalar_select %p24, %s26, %s17
    %p28 = scmp.ge.s32.totalorder %s27, 2
    %s29 = scalar_select %p28, 0, %s27
    %s30 = ssub.s32 %s17, %s29
    %s31 = ssub.s32 %s18, %s25
    %s32 = sor.u32 %s30, %s31
    %p33 = scmp.eq.s32.totalorder %s32, 0
    %s35 = sadd.s32 %s34, 1
    %s36 = scalar_select %p33, %s34, %s35
    %p39 = pneg %p33
    %p40 = scmp.eq.s32.totalorder %s10, 7
    %p41 = por %p39, %p40
    %p42 = scmp.ne.s32.totalorder %s34, %s37
    %p43 = scmp.eq.s32.totalorder %s10, 0
    %p44 = por %p42, %p43
    %p45 = scmp.ne.s32.totalorder %s34, %s37
    %p46 = scmp.eq.s32.totalorder %s15, 7
    %p47 = por %p45, %p46
    %p48 = scmp.ne.s32.totalorder %s37, %s38
    %p49 = scmp.eq.s32.totalorder %s15, 0
    %p50 = por %p48, %p49
    %p51 = scmp.ne.s32.totalorder %s37, %s38
    %p52 = scmp.eq.s32.totalorder %s16, 7
    %p53 = por %p51, %p52
    %p55 = scmp.ne.s32.totalorder %s38, %s54
    %p56 = scmp.eq.s32.totalorder %s16, 0
    %p57 = por %p55, %p56
    %s58 = ssub.s32 %s17, %s29
    %s59 = ssub.s32 %s18, %s25
    %s60 = sor.u32 %s58, %s59
    %p61 = scmp.eq.s32.totalorder %s60, 0
    %s63 = sadd.s32 %s62, 1
    %s64 = scalar_select %p61, %s62, %s63
    %p67 = pneg %p61
    %p68 = scmp.eq.s32.totalorder %s10, 7
    %p69 = por %p67, %p68
    %p70 = scmp.ne.s32.totalorder %s62, %s65
    %p71 = scmp.eq.s32.totalorder %s10, 0
    %p72 = por %p70, %p71
    %p73 = scmp.ne.s32.totalorder %s62, %s65
    %p74 = scmp.eq.s32.totalorder %s15, 7
    %p75 = por %p73, %p74
    %p76 = scmp.ne.s32.totalorder %s65, %s66
    %p77 = scmp.eq.s32.totalorder %s15, 0
    %p78 = por %p76, %p77
    %p79 = scmp.ne.s32.totalorder %s65, %s66
    %p80 = scmp.eq.s32.totalorder %s16, 7
    %p81 = por %p79, %p80
    %p83 = scmp.ne.s32.totalorder %s66, %s82
    %p84 = scmp.eq.s32.totalorder %s16, 0
    %p85 = por %p83, %p84
    %s86 = ssub.s32 %s17, %s29
    %s87 = ssub.s32 %s18, %s25
    %s88 = sor.u32 %s86, %s87
    %p89 = scmp.eq.s32.totalorder %s88, 0
    %s91 = sadd.s32 %s90, 1
    %s92 = scalar_select %p89, %s90, %s91
    %p95 = pneg %p89
    %p96 = scmp.eq.s32.totalorder %s10, 7
    %p97 = por %p95, %p96
    %p98 = scmp.ne.s32.totalorder %s90, %s93
    %p99 = scmp.eq.s32.totalorder %s10, 0
    %p100 = por %p98, %p99
    %p101 = scmp.ne.s32.totalorder %s90, %s93
    %p102 = scmp.eq.s32.totalorder %s15, 7
    %p103 = por %p101, %p102
    %p104 = scmp.ne.s32.totalorder %s93, %s94
    %p105 = scmp.eq.s32.totalorder %s15, 0
    %p106 = por %p104, %p105
    %p107 = scmp.ne.s32.totalorder %s93, %s94
    %p108 = scmp.eq.s32.totalorder %s16, 7
    %p109 = por %p107, %p108
    %p111 = scmp.ne.s32.totalorder %s94, %s110
    %p112 = scmp.eq.s32.totalorder %s16, 0
    %p113 = por %p111, %p112
    %s114 = ssub.s32 %s17, %s29
    %p115 = scmp.eq.s32.totalorder %s114, 0
    %s117 = sadd.s32 %s116, 1
    %s118 = scalar_select %p115, %s116, %s117
    %p121 = pneg %p115
    %p122 = scmp.eq.s32.totalorder %s10, 7
    %p123 = por %p121, %p122
    %p124 = scmp.ne.s32.totalorder %s116, %s119
    %p125 = scmp.eq.s32.totalorder %s10, 0
    %p126 = por %p124, %p125
    %p127 = scmp.ne.s32.totalorder %s116, %s119
    %p128 = scmp.eq.s32.totalorder %s15, 7
    %p129 = por %p127, %p128
    %p130 = scmp.ne.s32.totalorder %s119, %s120
    %p131 = scmp.eq.s32.totalorder %s15, 0
    %p132 = por %p130, %p131
    %p133 = scmp.ne.s32.totalorder %s119, %s120
    %p134 = scmp.eq.s32.totalorder %s16, 7
    %p135 = por %p133, %p134
    %p137 = scmp.ne.s32.totalorder %s120, %s136
    %p138 = scmp.eq.s32.totalorder %s16, 0
    %p139 = por %p137, %p138
    %s140 = ssub.s32 %s17, %s29
    %s141 = ssub.s32 %s18, %s25
    %s142 = sor.u32 %s140, %s141
    %p143 = scmp.eq.s32.totalorder %s142, 0
    %s145 = sadd.s32 %s144, 1
    %s146 = scalar_select %p143, %s144, %s145
    %p149 = pneg %p143
    %p150 = scmp.eq.s32.totalorder %s10, 7
    %p151 = por %p149, %p150
    %p152 = scmp.ne.s32.totalorder %s144, %s147
    %p153 = scmp.eq.s32.totalorder %s10, 0
    %p154 = por %p152, %p153
    %p155 = scmp.ne.s32.totalorder %s144, %s147
    %p156 = scmp.eq.s32.totalorder %s15, 7
    %p157 = por %p155, %p156
    %p158 = scmp.ne.s32.totalorder %s147, %s148
    %p159 = scmp.eq.s32.totalorder %s15, 0
    %p160 = por %p158, %p159
    %p161 = scmp.ne.s32.totalorder %s147, %s148
    %p162 = scmp.eq.s32.totalorder %s16, 7
    %p163 = por %p161, %p162
    %p165 = scmp.ne.s32.totalorder %s148, %s164
    %p166 = scmp.eq.s32.totalorder %s16, 0
    %p167 = por %p165, %p166
    %p168 = scmp.le.s32.totalorder 1, %s10
    %p169 = scmp.lt.s32.totalorder %s10, 9
    %p170 = pnand %p168, %p169
    %p171 = pneg %p170
    // Predicated region
    $region9: #{bert_forward.11} parent=5 // pred_check
      _
    $region10: #{bert_forward.11} parent=5 // pred_check_branch
      %173 = sbr.rel (%p170) target = $region12
    $region11: #{bert_forward.11} parent=5 // pred_region
      %s174 = ssub.s32 %s10, 1
    $region12: #{bert_forward.11} parent=5 // pred_fallthru
      _
    %p175 = scmp.lt.s32.totalorder %s10, 8
    // Predicated region
    $region13: #{bert_forward.11} parent=5 // pred_check
      %p176 = pneg %p175
    $region14: #{bert_forward.11} parent=5 // pred_check_branch
      %178 = sbr.rel (%p176) target = $region16
    $region15: #{bert_forward.11} parent=5 // pred_region
      // Predicated region
      $region17: #{bert_forward.11} parent=15 // pred_check
        %p179 = pneg %p44
      $region18: #{bert_forward.11} parent=15 // pred_check_branch
        %181 = sbr.rel (%p179) target = $region20
      $region19: #{bert_forward.11} parent=15 // pred_region
        %p182 = scmp.lt.s32.totalorder %s17, 1
        %s183 = scalar_select %p182, %s17, 1
        %p184 = scmp.lt.s32.totalorder %s18, 3
        %s185 = scalar_select %p184, %s18, 3
        %s186 = smul.addr %s183, 4
        %s187 = sadd.s32 %s185, %s186
        %s188 = smul.addr %s187, 4
        %s189 = scalar_lea.vmem %s0, %s188
      $region20: #{bert_forward.11} parent=15 // pred_fallthru
        _
      // Predicated region
      $region21: #{bert_forward.11} parent=15 // pred_check
        %p190 = pneg %p72
      $region22: #{bert_forward.11} parent=15 // pred_check_branch
        %192 = sbr.rel (%p190) target = $region24
      $region23: #{bert_forward.11} parent=15 // pred_region
        %p193 = scmp.lt.s32.totalorder %s17, 1
        %s194 = scalar_select %p193, %s17, 1
        %p195 = scmp.lt.s32.totalorder %s18, 3
        %s196 = scalar_select %p195, %s18, 3
        %s197 = smul.addr %s194, 4
        %s198 = sadd.s32 %s196, %s197
        %s199 = smul.addr %s198, 4
        %s200 = scalar_lea.vmem %s1, %s199
      $region24: #{bert_forward.11} parent=15 // pred_fallthru
        _
      // Predicated region
      $region25: #{bert_forward.11} parent=15 // pred_check
        %p201 = pneg %p100
      $region26: #{bert_forward.11} parent=15 // pred_check_branch
        %203 = sbr.rel (%p201) target = $region28
      $region27: #{bert_forward.11} parent=15 // pred_region
        %p204 = scmp.lt.s32.totalorder %s17, 1
        %s205 = scalar_select %p204, %s17, 1
        %p206 = scmp.lt.s32.totalorder %s18, 3
        %s207 = scalar_select %p206, %s18, 3
        %s208 = smul.addr %s205, 4
        %s209 = sadd.s32 %s207, %s208
        %s210 = smul.addr %s209, 4
        %s211 = scalar_lea.vmem %s2, %s210
      $region28: #{bert_forward.11} parent=15 // pred_fallthru
        _
      // Predicated region
      $region29: #{bert_forward.11} parent=15 // pred_check
        %p212 = pneg %p126
      $region30: #{bert_forward.11} parent=15 // pred_check_branch
        %214 = sbr.rel (%p212) target = $region32
      $region31: #{bert_forward.11} parent=15 // pred_region
        %p215 = scmp.lt.s32.totalorder %s17, 1
        %s216 = scalar_select %p215, %s17, 1
        %s217 = scalar_lea.vmem %s3, %s216
      $region32: #{bert_forward.11} parent=15 // pred_fallthru
        _
    $region16: #{bert_forward.11} parent=5 // pred_fallthru
      _
    %p218 = scmp.le.s32.totalorder 1, %s10
    %p219 = scmp.lt.s32.totalorder %s10, 9
    %p220 = pnand %p218, %p219
    %p221 = pneg %p220
    // Predicated region
    $region33: #{bert_forward.11} parent=5 // pred_check
      _
    $region34: #{bert_forward.11} parent=5 // pred_check_branch
      %223 = sbr.rel (%p220) target = $region36
    $region35: #{bert_forward.11} parent=5 // pred_region
      %s224 = ssub.s32 %s10, 1
      %p225 = scmp.lt.s32.totalorder %s19, 1
      %s226 = scalar_select %p225, %s19, 1
      %p227 = scmp.lt.s32.totalorder %s20, 3
      %s228 = scalar_select %p227, %s20, 3
      %s229 = smul.addr %s226, 4
      %s230 = sadd.s32 %s228, %s229
      %s231 = smul.addr %s230, 4
      %s232 = scalar_lea.vmem %s0, %s231
      %p233 = pneg %p50
      %p234 = pneg %p47
      %p235 = scmp.lt.s32.totalorder %s19, 1
      %s236 = scalar_select %p235, %s19, 1
      %p237 = scmp.lt.s32.totalorder %s20, 3
      %s238 = scalar_select %p237, %s20, 3
      %s239 = smul.addr %s236, 4
      %s240 = sadd.s32 %s238, %s239
      %s241 = smul.addr %s240, 4
      %s242 = scalar_lea.vmem %s1, %s241
      %p243 = pneg %p78
      %p244 = pneg %p75
      %p245 = scmp.lt.s32.totalorder %s19, 1
      %s246 = scalar_select %p245, %s19, 1
      %p247 = scmp.lt.s32.totalorder %s20, 3
      %s248 = scalar_select %p247, %s20, 3
      %s249 = smul.addr %s246, 4
      %s250 = sadd.s32 %s248, %s249
      %s251 = smul.addr %s250, 4
      %s252 = scalar_lea.vmem %s2, %s251
      %p253 = pneg %p106
      %p254 = pneg %p103
      %p255 = scmp.lt.s32.totalorder %s19, 1
      %s256 = scalar_select %p255, %s19, 1
      %s257 = scalar_lea.vmem %s3, %s256
      %p258 = pneg %p132
      %p259 = pneg %p129
      %p260 = pneg %p160
      %p261 = pneg %p157
      %p262 = scmp.lt.s32.totalorder %s19, 1
      %s263 = scalar_select %p262, %s19, 1
      %p264 = scmp.lt.s32.totalorder %s20, 3
      %s265 = scalar_select %p264, %s20, 3
      %s266 = smul.addr %s263, 4
      %s267 = sadd.s32 %s265, %s266
      %s268 = smul.addr %s267, 4
      %s269 = scalar_lea.vmem %s4, %s268
      %p270 = scmp.lt.s32.totalorder %s19, 1
      %s271 = scalar_select %p270, %s19, 1
      %p272 = scmp.lt.s32.totalorder %s20, 3
      %s273 = scalar_select %p272, %s20, 3
      %s274 = smul.addr %s271, 4
      %s275 = sadd.s32 %s273, %s274
      %s276 = smul.addr %s275, 4
      %s277 = scalar_lea.vmem %s0, %s276
      %p278 = scmp.lt.s32.totalorder %s19, 1
      %s279 = scalar_select %p278, %s19, 1
      %p280 = scmp.lt.s32.totalorder %s20, 3
      %s281 = scalar_select %p280, %s20, 3
      %s282 = smul.addr %s279, 4
      %s283 = sadd.s32 %s281, %s282
      %s284 = smul.addr %s283, 4
      %s285 = scalar_lea.vmem %s1, %s284
      %p286 = scmp.lt.s32.totalorder %s19, 1
      %s287 = scalar_select %p286, %s19, 1
      %p288 = scmp.lt.s32.totalorder %s20, 3
      %s289 = scalar_select %p288, %s20, 3
      %s290 = smul.addr %s287, 4
      %s291 = sadd.s32 %s289, %s290
      %s292 = smul.addr %s291, 4
      %s293 = scalar_lea.vmem %s2, %s292
      %p294 = scmp.lt.s32.totalorder %s19, 1
      %s295 = scalar_select %p294, %s19, 1
      %s296 = scalar_lea.vmem %s3, %s295
      %p297 = scmp.lt.s32.totalorder %s19, 1
      %s298 = scalar_select %p297, %s19, 1
      %p299 = scmp.lt.s32.totalorder %s20, 3
      %s300 = scalar_select %p299, %s20, 3
      %s301 = smul.addr %s298, 4
      %s302 = sadd.s32 %s300, %s301
      %s303 = smul.addr %s302, 4
      %s304 = scalar_lea.vmem %s4, %s303
      %v306 = vld [vmem:[%s277] sm:$0xf]
      %v307 = vld [vmem:[%s285] sm:$0xf]
      %v308 = vld [vmem:[%s293] sm:$0xf]
      %vm309 = vcmask 64512
      %v311 = vsel %vm309, %v306, 0
      %v314 = vsel %vm309, %v307, 0
      %316 = vmatpush.bf16.xpose.msra.mxu0 0
      %317 = vmatpush.bf16.xpose.msra.mxu0 0
      %318 = vmatpush.bf16.xpose.msra.mxu0 0
      %319 = vmatpush.bf16.xpose.msra.mxu0 0
      %320 = vmatpush.bf16.xpose.msra.mxu0 0
      %321 = vmatpush.bf16.xpose.msra.mxu0 0
      %322 = vmatpush.bf16.xpose.msra.mxu0 0
      %323 = vmatpush.bf16.xpose.msra.mxu0 %v314
      %324 = vmatmul.bf16.gmra.mxu0 %v311
      %v325 = vpop.f32.mrf.mxu0
      %v326 = vadd.f32 0.0, %v325
      %v327 = vpop.f32.mrf.mxu0
      %328 = vdwg.mxu0
      %v329 = vmul.f32 %v326, 0.35355338
      %v330 = vld [vmem:[%s296] sm:$0x1]
      %v332 = vperm.slane %v330, 0
      %v334 = vadd.f32 %v329, %v332
      %v335 = vsel %vm309, %v334, -inf
      %336 = vmax.xlane.f32.xlu0 %v335
      %v337 = vpop.xlane.xlu0 %336
      %v338 = vsub.f32 %v334, %v337
      %v339 = vmul.f32 %v338, 1.442695
      %v340 = vpow.pop %v339
      %v341 = vsel %vm309, %v340, 0.0
      %342 = vadd.xlane.f32.xlu0 %v341
      %v343 = vpop.xlane.xlu0 %342
      %v344 = vrcp.pop %v343
      %v345 = vmul.f32 %v340, %v344
      %v346 = vpack.c.bf16 %v345, %v345
      %v348 = vsel %vm309, %v346, 0
      %vm350 = vcmask 1043456
      %v352 = vsel %vm350, %v308, 0
      %354 = vmatpush.bf16.msra.mxu0 0
      %355 = vmatpush.bf16.msra.mxu0 0
      %356 = vmatpush.bf16.msra.mxu0 0
      %357 = vmatpush.bf16.msra.mxu0 0
      %358 = vmatpush.bf16.msra.mxu0 0
      %359 = vmatpush.bf16.msra.mxu0 0
      %360 = vmatpush.bf16.msra.mxu0 0
      %361 = vmatpush.bf16.msra.mxu0 %v352
      %362 = vmatmul.bf16.gmra.mxu0 %v348
      %v363 = vpop.f32.mrf.mxu0
      %v364 = vadd.f32 0.0, %v363
      %v365 = vpop.f32.mrf.mxu0
      %366 = vdwg.mxu0
      %v367 = vpack.c.bf16 %v364, %v364
      %vm368 = vcmask 60416
      %369 = vst.msk [vmem:[%s304] sm:$0xf] %vm368, %v367
      %p370 = scmp.lt.s32.totalorder %s19, 1
      %s371 = scalar_select %p370, %s19, 1
      %p372 = scmp.lt.s32.totalorder %s20, 3
      %s373 = scalar_select %p372, %s20, 3
      %s374 = smul.addr %s371, 4
      %s375 = sadd.s32 %s373, %s374
      %s376 = smul.addr %s375, 4
      %s377 = scalar_lea.vmem %s4, %s376
      // Predicated region
      $region37: #{bert_forward.11} parent=35 // pred_check
        %p378 = pneg %p157
      $region38: #{bert_forward.11} parent=35 // pred_check_branch
        %380 = sbr.rel (%p378) target = $region40
      $region39: #{bert_forward.11} parent=35 // pred_region
        _
      $region40: #{bert_forward.11} parent=35 // pred_fallthru
        _
    $region36: #{bert_forward.11} parent=5 // pred_fallthru
      _
    %p381 = scmp.le.s32.totalorder 2, %s10
    // Predicated region
    $region41: #{bert_forward.11} parent=5 // pred_check
      %p382 = pneg %p381
    $region42: #{bert_forward.11} parent=5 // pred_check_branch
      %384 = sbr.rel (%p382) target = $region44
    $region43: #{bert_forward.11} parent=5 // pred_region
      %s385 = ssub.s32 %s10, 2
      // Predicated region
      $region45: #{bert_forward.11} parent=43 // pred_check
        %p386 = pneg %p163
      $region46: #{bert_forward.11} parent=43 // pred_check_branch
        %388 = sbr.rel (%p386) target = $region48
      $region47: #{bert_forward.11} parent=43 // pred_region
        %p389 = scmp.lt.s32.totalorder %s21, 1
        %s390 = scalar_select %p389, %s21, 1
        %p391 = scmp.lt.s32.totalorder %s22, 3
        %s392 = scalar_select %p391, %s22, 3
        %s393 = smul.addr %s390, 4
        %s394 = sadd.s32 %s392, %s393
        %s395 = smul.addr %s394, 4
        %s396 = scalar_lea.vmem %s4, %s395
      $region48: #{bert_forward.11} parent=43 // pred_fallthru
        _
    $region44: #{bert_forward.11} parent=5 // pred_fallthru
      _
  $region6: #{bert_forward.11} parent=0 // loop_footer
    %s14 = sadd.s32 1, %s10
  $region7: #{bert_forward.11} parent=0 // loop_footer_branch
    %9 = sbr.rel target = $region3
  $region8: #{bert_forward.11} parent=0 // loop_exit
    _

// kernel: bert_forward.10
$region0: #{bert_forward.10}
  #allocation0 [shape = 'u32[]', space=smem, size = 0x4, offset = 0x4, fixed_abs, tag = 'smem constant byte address 0x4 - core index']
  #allocation1 [shape = 'u32[72,128]{1,0:T(1,128)}', space=vmem, size = 0x9000, scoped, tag = 'internal scratch']
  %s0 = inlined_call_operand.vmem [shape: f32[16,32], index: 0, kind: input, shape index: {}]
  %s1 = inlined_call_operand.vmem [shape: bf16[32,96], index: 1, kind: input, shape index: {}]
  %s2 = inlined_call_operand.vmem [shape: f32[1,96], index: 2, kind: input, shape index: {}]
  %s3 = inlined_call_operand.vmem [shape: bf16[16,96], index: 3, kind: output, shape index: {}]
  %s4 = sld [smem:[#allocation0]]
  $region22: #{bert_forward.10} parent=0
    _
  %s6 = ssub.s32 1, %s4
  %s7 = scalar_select 0, %s6, %s4
  // Predicated region
  $region2: #{bert_forward.10} parent=0 // pred_check
    _
  $region3: #{bert_forward.10} parent=0 // pred_check_branch
    %9 = sbr.rel (0) target = $region5
  $region4: #{bert_forward.10} parent=0 // pred_region
    _
  $region5: #{bert_forward.10} parent=0 // pred_fallthru
    _
  // Predicated region
  $region6: #{bert_forward.10} parent=0 // pred_check
    _
  $region7: #{bert_forward.10} parent=0 // pred_check_branch
    %11 = sbr.rel (0) target = $region9
  $region8: #{bert_forward.10} parent=0 // pred_region
    _
  $region9: #{bert_forward.10} parent=0 // pred_fallthru
    _
  // Predicated region
  $region10: #{bert_forward.10} parent=0 // pred_check
    _
  $region11: #{bert_forward.10} parent=0 // pred_check_branch
    %13 = sbr.rel (0) target = $region13
  $region12: #{bert_forward.10} parent=0 // pred_region
    _
  $region13: #{bert_forward.10} parent=0 // pred_fallthru
    _
  %v15 = vld [vmem:[%s0] sm:$0xff]
  %v16 = vld [vmem:[%s0 + $0x8] sm:$0xff]
  %v17 = vpack.c.bf16 %v16, %v15
  %v18 = vld [vmem:[%s1] sm:$0xf]
  %v19 = vld [vmem:[%s1 + $0x4] sm:$0xf]
  %v20 = vld [vmem:[%s1 + $0x8] sm:$0xf]
  %v21 = vld [vmem:[%s1 + $0xc] sm:$0xf]
  %v22 = vld [vmem:[%s2] sm:$0x1]
  %v24 = vperm.slane %v22, 0
  %v30 = vunpack.c.l.b16 %v18
  %v31 = vunpack.c.l.b16 %v19
  %v32 = vunpack.c.l.b16 %v20
  %v33 = vunpack.c.l.b16 %v21
  %v34 = vpack.c.b16 %v31, %v30
  %v35 = vpack.c.b16 %v33, %v32
  %vm38 = vcmask 261120
  %v40 = vsel %vm38, %v17, 0
  %42 = vmatpush.bf16.msra.mxu0 0
  %43 = vmatpush.bf16.msra.mxu0 0
  %44 = vmatpush.bf16.msra.mxu0 0
  %45 = vmatpush.bf16.msra.mxu0 0
  %46 = vmatpush.bf16.msra.mxu0 0
  %47 = vmatpush.bf16.msra.mxu0 0
  %48 = vmatpush.bf16.msra.mxu0 %v35
  %49 = vmatpush.bf16.msra.mxu0 %v34
  %50 = vmatmul.bf16.gmra.mxu0 %v40
  %v51 = vpop.f32.mrf.mxu0
  %v52 = vadd.f32 %v24, %v51
  %v53 = vpop.f32.mrf.mxu0
  %v54 = vadd.f32 %v24, %v53
  %55 = vdwg.mxu0
  %v56 = vpack.c.bf16 %v52, %v52
  %v57 = vpack.c.bf16 %v54, %v54
  %vm58 = vcmask 781312
  %59 = vst.msk [vmem:[%s3] sm:$0xf] %vm58, %v56
  %60 = vst.msk [vmem:[%s3 + $0x4] sm:$0xf] %vm58, %v57
  // Predicated region
  $region14: #{bert_forward.10} parent=0 // pred_check
    _
  $region15: #{bert_forward.10} parent=0 // pred_check_branch
    %62 = sbr.rel (0) target = $region17
  $region16: #{bert_forward.10} parent=0 // pred_region
    _
  $region17: #{bert_forward.10} parent=0 // pred_fallthru
    _
  // Predicated region
  $region18: #{bert_forward.10} parent=0 // pred_check
    _
  $region19: #{bert_forward.10} parent=0 // pred_check_branch
    %64 = sbr.rel (0) target = $region21
  $region20: #{bert_forward.10} parent=0 // pred_region
    _
  $region21: #{bert_forward.10} parent=0 // pred_fallthru
    _

// kernel: bert_forward.12
$region0: #{bert_forward.12}
  #allocation0 [shape = 'u32[]', space=smem, size = 0x4, offset = 0x4, fixed_abs, tag = 'smem constant byte address 0x4 - core index']
  #allocation1 [shape = 'u32[72,128]{1,0:T(1,128)}', space=vmem, size = 0x9000, scoped, tag = 'internal scratch']
  %s0 = inlined_call_operand.vmem [shape: bf16[16,32], index: 0, kind: input, shape index: {}]
  %s1 = inlined_call_operand.vmem [shape: f32[16,32], index: 1, kind: input, shape index: {}]
  %s2 = inlined_call_operand.vmem [shape: bf16[32,32], index: 2, kind: input, shape index: {}]
  %s3 = inlined_call_operand.vmem [shape: f32[1,32], index: 3, kind: input, shape index: {}]
  %s4 = inlined_call_operand.vmem [shape: f32[1,32], index: 4, kind: input, shape index: {}]
  %s5 = inlined_call_operand.vmem [shape: f32[1,32], index: 5, kind: input, shape index: {}]
  %s6 = inlined_call_operand.vmem [shape: f32[16,32], index: 6, kind: output, shape index: {}]
  %s7 = sld [smem:[#allocation0]]
  $region34: #{bert_forward.12} parent=0
    _
  %s9 = ssub.s32 1, %s7
  %s10 = scalar_select 0, %s9, %s7
  // Predicated region
  $region2: #{bert_forward.12} parent=0 // pred_check
    _
  $region3: #{bert_forward.12} parent=0 // pred_check_branch
    %12 = sbr.rel (0) target = $region5
  $region4: #{bert_forward.12} parent=0 // pred_region
    _
  $region5: #{bert_forward.12} parent=0 // pred_fallthru
    _
  // Predicated region
  $region6: #{bert_forward.12} parent=0 // pred_check
    _
  $region7: #{bert_forward.12} parent=0 // pred_check_branch
    %14 = sbr.rel (0) target = $region9
  $region8: #{bert_forward.12} parent=0 // pred_region
    _
  $region9: #{bert_forward.12} parent=0 // pred_fallthru
    _
  // Predicated region
  $region10: #{bert_forward.12} parent=0 // pred_check
    _
  $region11: #{bert_forward.12} parent=0 // pred_check_branch
    %16 = sbr.rel (0) target = $region13
  $region12: #{bert_forward.12} parent=0 // pred_region
    _
  $region13: #{bert_forward.12} parent=0 // pred_fallthru
    _
  // Predicated region
  $region14: #{bert_forward.12} parent=0 // pred_check
    _
  $region15: #{bert_forward.12} parent=0 // pred_check_branch
    %18 = sbr.rel (0) target = $region17
  $region16: #{bert_forward.12} parent=0 // pred_region
    _
  $region17: #{bert_forward.12} parent=0 // pred_fallthru
    _
  // Predicated region
  $region18: #{bert_forward.12} parent=0 // pred_check
    _
  $region19: #{bert_forward.12} parent=0 // pred_check_branch
    %20 = sbr.rel (0) target = $region21
  $region20: #{bert_forward.12} parent=0 // pred_region
    _
  $region21: #{bert_forward.12} parent=0 // pred_fallthru
    _
  // Predicated region
  $region22: #{bert_forward.12} parent=0 // pred_check
    _
  $region23: #{bert_forward.12} parent=0 // pred_check_branch
    %22 = sbr.rel (0) target = $region25
  $region24: #{bert_forward.12} parent=0 // pred_region
    _
  $region25: #{bert_forward.12} parent=0 // pred_fallthru
    _
  %v24 = vld [vmem:[%s0] sm:$0xf]
  %v25 = vld [vmem:[%s0 + $0x4] sm:$0xf]
  %v26 = vld [vmem:[%s2] sm:$0xf]
  %v27 = vld [vmem:[%s2 + $0x4] sm:$0xf]
  %v28 = vld [vmem:[%s2 + $0x8] sm:$0xf]
  %v29 = vld [vmem:[%s2 + $0xc] sm:$0xf]
  %v30 = vld [vmem:[%s3] sm:$0x1]
  %v32 = vperm.slane %v30, 0
  %v36 = vunpack.c.l.b16 %v24
  %v37 = vunpack.c.l.b16 %v25
  %v38 = vpack.c.b16 %v37, %v36
  %v43 = vunpack.c.l.b16 %v26
  %v44 = vunpack.c.l.b16 %v27
  %v45 = vunpack.c.l.b16 %v28
  %v46 = vunpack.c.l.b16 %v29
  %v47 = vpack.c.b16 %v44, %v43
  %v48 = vpack.c.b16 %v46, %v45
  %vm51 = vcmask 261120
  %v53 = vsel %vm51, %v38, 0
  %55 = vmatpush.bf16.msra.mxu0 0
  %56 = vmatpush.bf16.msra.mxu0 0
  %57 = vmatpush.bf16.msra.mxu0 0
  %58 = vmatpush.bf16.msra.mxu0 0
  %59 = vmatpush.bf16.msra.mxu0 0
  %60 = vmatpush.bf16.msra.mxu0 0
  %61 = vmatpush.bf16.msra.mxu0 %v48
  %62 = vmatpush.bf16.msra.mxu0 %v47
  %63 = vmatmul.bf16.gmra.mxu0 %v53
  %v64 = vpop.f32.mrf.mxu0
  %v65 = vadd.f32 %v32, %v64
  %v66 = vpop.f32.mrf.mxu0
  %v67 = vadd.f32 %v32, %v66
  %68 = vdwg.mxu0
  %v69 = vld [vmem:[%s1] sm:$0xff]
  %v70 = vld [vmem:[%s1 + $0x8] sm:$0xff]
  %v71 = vadd.f32 %v65, %v69
  %v72 = vadd.f32 %v67, %v70
  %v73 = vld [vmem:[%s4] sm:$0x1]
  %v74 = vld [vmem:[%s5] sm:$0x1]
  %v75 = vsel %vm51, %v71, 0.0
  %76 = vadd.xlane.f32.xlu0 %v75
  %v77 = vpop.xlane.xlu0 %76
  %v78 = vsel %vm51, %v72, 0.0
  %79 = vadd.xlane.f32.xlu0 %v78
  %v80 = vpop.xlane.xlu0 %79
  %v81 = vrcp.pop 32.0
  %v82 = vmul.f32 32.0, %v81
  %v83 = vsub.f32 1.0, %v82
  %v84 = vmul.f32 %v81, %v83
  %v85 = vadd.f32 %v81, %v84
  %vm86 = vweird.f32 %v81
  %v87 = vsel %vm86, %v81, %v85
  %v88 = vmul.f32 %v77, %v87
  %v89 = vmul.f32 %v80, %v87
  %v90 = vsub.f32 %v71, %v88
  %v91 = vsub.f32 %v72, %v89
  %v92 = vmul.f32 %v90, %v90
  %v93 = vmul.f32 %v91, %v91
  %v94 = vsel %vm51, %v92, 0.0
  %95 = vadd.xlane.f32.xlu0 %v94
  %v96 = vpop.xlane.xlu0 %95
  %v97 = vsel %vm51, %v93, 0.0
  %98 = vadd.xlane.f32.xlu0 %v97
  %v99 = vpop.xlane.xlu0 %98
  %v100 = vmul.f32 %v96, %v87
  %v101 = vmul.f32 %v99, %v87
  %v102 = vadd.f32 %v100, 1e-12
  %v103 = vadd.f32 %v101, 1e-12
  %v104 = vrsqrt.pop %v102
  %v105 = vmul.f32 %v104, %v102
  %v106 = vmul.f32 %v105, %v104
  %v107 = vmul.f32 0.5, %v106
  %v108 = vsub.f32 1.5, %v107
  %v109 = vmul.f32 %v104, %v108
  %vm110 = vweird.f32 %v102
  %vm111 = vweird.f32 %v104
  %vm112 = vmor %vm110, %vm111
  %v113 = vsel %vm112, %v104, %v109
  %v114 = vrsqrt.pop %v103
  %v115 = vmul.f32 %v114, %v103
  %v116 = vmul.f32 %v115, %v114
  %v117 = vmul.f32 0.5, %v116
  %v118 = vsub.f32 1.5, %v117
  %v119 = vmul.f32 %v114, %v118
  %vm120 = vweird.f32 %v103
  %vm121 = vweird.f32 %v114
  %vm122 = vmor %vm120, %vm121
  %v123 = vsel %vm122, %v114, %v119
  %v124 = vmul.f32 %v90, %v113
  %v125 = vmul.f32 %v91, %v123
  %v127 = vperm.slane %v73, 0
  %v129 = vmul.f32 %v124, %v127
  %v130 = vmul.f32 %v125, %v127
  %v132 = vperm.slane %v74, 0
  %v134 = vadd.f32 %v129, %v132
  %v135 = vadd.f32 %v130, %v132
  %136 = vst.msk [vmem:[%s6] sm:$0xff] %vm51, %v134
  %137 = vst.msk [vmem:[%s6 + $0x8] sm:$0xff] %vm51, %v135
  // Predicated region
  $region26: #{bert_forward.12} parent=0 // pred_check
    _
  $region27: #{bert_forward.12} parent=0 // pred_check_branch
    %139 = sbr.rel (0) target = $region29
  $region28: #{bert_forward.12} parent=0 // pred_region
    _
  $region29: #{bert_forward.12} parent=0 // pred_fallthru
    _
  // Predicated region
  $region30: #{bert_forward.12} parent=0 // pred_check
    _
  $region31: #{bert_forward.12} parent=0 // pred_check_branch
    %141 = sbr.rel (0) target = $region33
  $region32: #{bert_forward.12} parent=0 // pred_region
    _
  $region33: #{bert_forward.12} parent=0 // pred_fallthru
    _

// kernel: bert_forward.13
$region0: #{bert_forward.13}
  #allocation0 [shape = 'u32[]', space=smem, size = 0x4, offset = 0x4, fixed_abs, tag = 'smem constant byte address 0x4 - core index']
  #allocation1 [shape = 'u32[72,128]{1,0:T(1,128)}', space=vmem, size = 0x9000, scoped, tag = 'internal scratch']
  %s0 = inlined_call_operand.vmem [shape: f32[16,32], index: 0, kind: input, shape index: {}]
  %s1 = inlined_call_operand.vmem [shape: bf16[32,128], index: 1, kind: input, shape index: {}]
  %s2 = inlined_call_operand.vmem [shape: f32[1,128], index: 2, kind: input, shape index: {}]
  %s3 = inlined_call_operand.vmem [shape: bf16[128,32], index: 3, kind: input, shape index: {}]
  %s4 = inlined_call_operand.vmem [shape: f32[1,32], index: 4, kind: input, shape index: {}]
  %s5 = inlined_call_operand.vmem [shape: f32[1,32], index: 5, kind: input, shape index: {}]
  %s6 = inlined_call_operand.vmem [shape: f32[1,32], index: 6, kind: input, shape index: {}]
  %s7 = inlined_call_operand.vmem [shape: f32[16,32], index: 7, kind: output, shape index: {}]
  %s8 = sld [smem:[#allocation0]]
  $region38: #{bert_forward.13} parent=0
    _
  %s10 = ssub.s32 1, %s8
  %s11 = scalar_select 0, %s10, %s8
  // Predicated region
  $region2: #{bert_forward.13} parent=0 // pred_check
    _
  $region3: #{bert_forward.13} parent=0 // pred_check_branch
    %13 = sbr.rel (0) target = $region5
  $region4: #{bert_forward.13} parent=0 // pred_region
    _
  $region5: #{bert_forward.13} parent=0 // pred_fallthru
    _
  // Predicated region
  $region6: #{bert_forward.13} parent=0 // pred_check
    _
  $region7: #{bert_forward.13} parent=0 // pred_check_branch
    %15 = sbr.rel (0) target = $region9
  $region8: #{bert_forward.13} parent=0 // pred_region
    _
  $region9: #{bert_forward.13} parent=0 // pred_fallthru
    _
  // Predicated region
  $region10: #{bert_forward.13} parent=0 // pred_check
    _
  $region11: #{bert_forward.13} parent=0 // pred_check_branch
    %17 = sbr.rel (0) target = $region13
  $region12: #{bert_forward.13} parent=0 // pred_region
    _
  $region13: #{bert_forward.13} parent=0 // pred_fallthru
    _
  // Predicated region
  $region14: #{bert_forward.13} parent=0 // pred_check
    _
  $region15: #{bert_forward.13} parent=0 // pred_check_branch
    %19 = sbr.rel (0) target = $region17
  $region16: #{bert_forward.13} parent=0 // pred_region
    _
  $region17: #{bert_forward.13} parent=0 // pred_fallthru
    _
  // Predicated region
  $region18: #{bert_forward.13} parent=0 // pred_check
    _
  $region19: #{bert_forward.13} parent=0 // pred_check_branch
    %21 = sbr.rel (0) target = $region21
  $region20: #{bert_forward.13} parent=0 // pred_region
    _
  $region21: #{bert_forward.13} parent=0 // pred_fallthru
    _
  // Predicated region
  $region22: #{bert_forward.13} parent=0 // pred_check
    _
  $region23: #{bert_forward.13} parent=0 // pred_check_branch
    %23 = sbr.rel (0) target = $region25
  $region24: #{bert_forward.13} parent=0 // pred_region
    _
  $region25: #{bert_forward.13} parent=0 // pred_fallthru
    _
  // Predicated region
  $region26: #{bert_forward.13} parent=0 // pred_check
    _
  $region27: #{bert_forward.13} parent=0 // pred_check_branch
    %25 = sbr.rel (0) target = $region29
  $region28: #{bert_forward.13} parent=0 // pred_region
    _
  $region29: #{bert_forward.13} parent=0 // pred_fallthru
    _
  %v27 = vld [vmem:[%s0] sm:$0xff]
  %v28 = vld [vmem:[%s0 + $0x8] sm:$0xff]
  %v29 = vpack.c.bf16 %v28, %v27
  %v30 = vld [vmem:[%s1] sm:$0xf]
  %v31 = vld [vmem:[%s1 + $0x4] sm:$0xf]
  %v32 = vld [vmem:[%s1 + $0x8] sm:$0xf]
  %v33 = vld [vmem:[%s1 + $0xc] sm:$0xf]
  %v34 = vld [vmem:[%s2] sm:$0x1]
  %v36 = vperm.slane %v34, 0
  %v42 = vunpack.c.l.b16 %v30
  %v43 = vunpack.c.l.b16 %v31
  %v44 = vunpack.c.l.b16 %v32
  %v45 = vunpack.c.l.b16 %v33
  %v46 = vpack.c.b16 %v43, %v42
  %v47 = vpack.c.b16 %v45, %v44
  %vm50 = vcmask 261120
  %v52 = vsel %vm50, %v29, 0
  %54 = vmatpush.bf16.msra.mxu0 0
  %55 = vmatpush.bf16.msra.mxu0 0
  %56 = vmatpush.bf16.msra.mxu0 0
  %57 = vmatpush.bf16.msra.mxu0 0
  %58 = vmatpush.bf16.msra.mxu0 0
  %59 = vmatpush.bf16.msra.mxu0 0
  %60 = vmatpush.bf16.msra.mxu0 %v47
  %61 = vmatpush.bf16.msra.mxu0 %v46
  %62 = vmatmul.bf16.gmra.mxu0 %v52
  %v63 = vpop.f32.mrf.mxu0
  %v64 = vadd.f32 %v36, %v63
  %v65 = vpop.f32.mrf.mxu0
  %v66 = vadd.f32 %v36, %v65
  %67 = vdwg.mxu0
  %v68 = vmul.f32 %v64, %v64
  %v69 = vmul.f32 %v66, %v66
  %v70 = vmul.f32 %v64, %v68
  %v71 = vmul.f32 %v66, %v69
  %v72 = vmul.f32 %v70, 0.044715
  %v73 = vmul.f32 %v71, 0.044715
  %v74 = vadd.f32 %v64, %v72
  %v75 = vadd.f32 %v66, %v73
  %v76 = vmul.f32 %v74, 0.7978846
  %v77 = vmul.f32 %v75, 0.7978846
  %v78 = vtanh.pop %v76
  %v79 = vtanh.pop %v77
  %v80 = vadd.f32 %v78, 1.0
  %v81 = vadd.f32 %v79, 1.0
  %v82 = vmul.f32 %v80, 0.5
  %v83 = vmul.f32 %v81, 0.5
  %v84 = vmul.f32 %v64, %v82
  %v85 = vmul.f32 %v66, %v83
  %v86 = vpack.c.bf16 %v85, %v84
  %v87 = vld [vmem:[%s3] sm:$0xf]
  %v88 = vld [vmem:[%s3 + $0x4] sm:$0xf]
  %v89 = vld [vmem:[%s3 + $0x8] sm:$0xf]
  %v90 = vld [vmem:[%s3 + $0xc] sm:$0xf]
  %v91 = vld [vmem:[%s3 + $0x10] sm:$0xf]
  %v92 = vld [vmem:[%s3 + $0x14] sm:$0xf]
  %v93 = vld [vmem:[%s3 + $0x18] sm:$0xf]
  %v94 = vld [vmem:[%s3 + $0x1c] sm:$0xf]
  %v95 = vld [vmem:[%s3 + $0x20] sm:$0xf]
  %v96 = vld [vmem:[%s3 + $0x24] sm:$0xf]
  %v97 = vld [vmem:[%s3 + $0x28] sm:$0xf]
  %v98 = vld [vmem:[%s3 + $0x2c] sm:$0xf]
  %v99 = vld [vmem:[%s3 + $0x30] sm:$0xf]
  %v100 = vld [vmem:[%s3 + $0x34] sm:$0xf]
  %v101 = vld [vmem:[%s3 + $0x38] sm:$0xf]
  %v102 = vld [vmem:[%s3 + $0x3c] sm:$0xf]
  %v103 = vld [vmem:[%s4] sm:$0x1]
  %v105 = vperm.slane %v103, 0
  %v123 = vunpack.c.l.b16 %v87
  %v124 = vunpack.c.l.b16 %v88
  %v125 = vunpack.c.l.b16 %v89
  %v126 = vunpack.c.l.b16 %v90
  %v127 = vunpack.c.l.b16 %v91
  %v128 = vunpack.c.l.b16 %v92
  %v129 = vunpack.c.l.b16 %v93
  %v130 = vunpack.c.l.b16 %v94
  %v131 = vunpack.c.l.b16 %v95
  %v132 = vunpack.c.l.b16 %v96
  %v133 = vunpack.c.l.b16 %v97
  %v134 = vunpack.c.l.b16 %v98
  %v135 = vunpack.c.l.b16 %v99
  %v136 = vunpack.c.l.b16 %v100
  %v137 = vunpack.c.l.b16 %v101
  %v138 = vunpack.c.l.b16 %v102
  %v139 = vpack.c.b16 %v124, %v123
  %v140 = vpack.c.b16 %v126, %v125
  %v141 = vpack.c.b16 %v128, %v127
  %v142 = vpack.c.b16 %v130, %v129
  %v143 = vpack.c.b16 %v132, %v131
  %v144 = vpack.c.b16 %v134, %v133
  %v145 = vpack.c.b16 %v136, %v135
  %v146 = vpack.c.b16 %v138, %v137
  %155 = vmatpush.bf16.msra.mxu0 %v146
  %156 = vmatpush.bf16.msra.mxu0 %v145
  %157 = vmatpush.bf16.msra.mxu0 %v144
  %158 = vmatpush.bf16.msra.mxu0 %v143
  %159 = vmatpush.bf16.msra.mxu0 %v142
  %160 = vmatpush.bf16.msra.mxu0 %v141
  %161 = vmatpush.bf16.msra.mxu0 %v140
  %162 = vmatpush.bf16.msra.mxu0 %v139
  %163 = vmatmul.bf16.gmra.mxu0 %v86
  %v164 = vpop.f32.mrf.mxu0
  %v165 = vadd.f32 %v105, %v164
  %v166 = vpop.f32.mrf.mxu0
  %v167 = vadd.f32 %v105, %v166
  %168 = vdwg.mxu0
  %v169 = vadd.f32 %v165, %v27
  %v170 = vadd.f32 %v167, %v28
  %v171 = vld [vmem:[%s5] sm:$0x1]
  %v172 = vld [vmem:[%s6] sm:$0x1]
  %v173 = vsel %vm50, %v169, 0.0
  %174 = vadd.xlane.f32.xlu0 %v173
  %v175 = vpop.xlane.xlu0 %174
  %v176 = vsel %vm50, %v170, 0.0
  %177 = vadd.xlane.f32.xlu0 %v176
  %v178 = vpop.xlane.xlu0 %177
  %v179 = vrcp.pop 32.0
  %v180 = vmul.f32 32.0, %v179
  %v181 = vsub.f32 1.0, %v180
  %v182 = vmul.f32 %v179, %v181
  %v183 = vadd.f32 %v179, %v182
  %vm184 = vweird.f32 %v179
  %v185 = vsel %vm184, %v179, %v183
  %v186 = vmul.f32 %v175, %v185
  %v187 = vmul.f32 %v178, %v185
  %v188 = vsub.f32 %v169, %v186
  %v189 = vsub.f32 %v170, %v187
  %v190 = vmul.f32 %v188, %v188
  %v191 = vmul.f32 %v189, %v189
  %v192 = vsel %vm50, %v190, 0.0
  %193 = vadd.xlane.f32.xlu0 %v192
  %v194 = vpop.xlane.xlu0 %193
  %v195 = vsel %vm50, %v191, 0.0
  %196 = vadd.xlane.f32.xlu0 %v195
  %v197 = vpop.xlane.xlu0 %196
  %v198 = vmul.f32 %v194, %v185
  %v199 = vmul.f32 %v197, %v185
  %v200 = vadd.f32 %v198, 1e-12
  %v201 = vadd.f32 %v199, 1e-12
  %v202 = vrsqrt.pop %v200
  %v203 = vmul.f32 %v202, %v200
  %v204 = vmul.f32 %v203, %v202
  %v205 = vmul.f32 0.5, %v204
  %v206 = vsub.f32 1.5, %v205
  %v207 = vmul.f32 %v202, %v206
  %vm208 = vweird.f32 %v200
  %vm209 = vweird.f32 %v202
  %vm210 = vmor %vm208, %vm209
  %v211 = vsel %vm210, %v202, %v207
  %v212 = vrsqrt.pop %v201
  %v213 = vmul.f32 %v212, %v201
  %v214 = vmul.f32 %v213, %v212
  %v215 = vmul.f32 0.5, %v214
  %v216 = vsub.f32 1.5, %v215
  %v217 = vmul.f32 %v212, %v216
  %vm218 = vweird.f32 %v201
  %vm219 = vweird.f32 %v212
  %vm220 = vmor %vm218, %vm219
  %v221 = vsel %vm220, %v212, %v217
  %v222 = vmul.f32 %v188, %v211
  %v223 = vmul.f32 %v189, %v221
  %v225 = vperm.slane %v171, 0
  %v227 = vmul.f32 %v222, %v225
  %v228 = vmul.f32 %v223, %v225
  %v230 = vperm.slane %v172, 0
  %v232 = vadd.f32 %v227, %v230
  %v233 = vadd.f32 %v228, %v230
  %234 = vst.msk [vmem:[%s7] sm:$0xff] %vm50, %v232
  %235 = vst.msk [vmem:[%s7 + $0x8] sm:$0xff] %vm50, %v233
  // Predicated region
  $region30: #{bert_forward.13} parent=0 // pred_check
    _
  $region31: #{bert_forward.13} parent=0 // pred_check_branch
    %237 = sbr.rel (0) target = $region33
  $region32: #{bert_forward.13} parent=0 // pred_region
    _
  $region33: #{bert_forward.13} parent=0 // pred_fallthru
    _
  // Predicated region
  $region34: #{bert_forward.13} parent=0 // pred_check
    _
  $region35: #{bert_forward.13} parent=0 // pred_check_branch
    %239 = sbr.rel (0) target = $region37
  $region36: #{bert_forward.13} parent=0 // pred_region
    _
  $region37: #{bert_forward.13} parent=0 // pred_fallthru
    _

// kernel: bert_forward.17
$region0: #{bert_forward.17}
  #allocation0 [shape = 'u32[]', space=smem, size = 0x4, offset = 0x4, fixed_abs, tag = 'smem constant byte address 0x4 - core index']
  #allocation1 [shape = 'u32[72,128]{1,0:T(1,128)}', space=vmem, size = 0x9000, scoped, tag = 'internal scratch']
  %s0 = inlined_call_operand.vmem [shape: f32[16,32], index: 0, kind: input, shape index: {}]
  %s1 = inlined_call_operand.vmem [shape: bf16[32,128], index: 1, kind: input, shape index: {}]
  %s2 = inlined_call_operand.vmem [shape: f32[1,128], index: 2, kind: input, shape index: {}]
  %s3 = inlined_call_operand.vmem [shape: bf16[128,32], index: 3, kind: input, shape index: {}]
  %s4 = inlined_call_operand.vmem [shape: f32[1,32], index: 4, kind: input, shape index: {}]
  %s5 = inlined_call_operand.vmem [shape: f32[1,32], index: 5, kind: input, shape index: {}]
  %s6 = inlined_call_operand.vmem [shape: f32[1,32], index: 6, kind: input, shape index: {}]
  %s7 = inlined_call_operand.hbm [shape: f32[16,32], index: 7, kind: output, shape index: {}]
  %s8 = sld [smem:[#allocation0]]
  $region38: #{bert_forward.17} parent=0
    _
  %s10 = ssub.s32 1, %s8
  %s11 = scalar_select 0, %s10, %s8
  $region1: #{bert_forward.17} parent=0
    #allocation2 [shape = 'u8[8192]{0}', space=vmem, size = 0x2000, scoped, tag = 'output window, operand 0, single buffered']
    #allocation3 [shape = 's32[1]{0}', space=sflag, size = 0x4, scoped, tag = 'scoped memory for bert_forward.17']
    %12 = vsyncpa [#allocation3], 0
    // Predicated region
    $region2: #{bert_forward.17} parent=1 // pred_check
      _
    $region3: #{bert_forward.17} parent=1 // pred_check_branch
      %14 = sbr.rel (0) target = $region5
    $region4: #{bert_forward.17} parent=1 // pred_region
      _
    $region5: #{bert_forward.17} parent=1 // pred_fallthru
      _
    // Predicated region
    $region6: #{bert_forward.17} parent=1 // pred_check
      _
    $region7: #{bert_forward.17} parent=1 // pred_check_branch
      %16 = sbr.rel (0) target = $region9
    $region8: #{bert_forward.17} parent=1 // pred_region
      _
    $region9: #{bert_forward.17} parent=1 // pred_fallthru
      _
    // Predicated region
    $region10: #{bert_forward.17} parent=1 // pred_check
      _
    $region11: #{bert_forward.17} parent=1 // pred_check_branch
      %18 = sbr.rel (0) target = $region13
    $region12: #{bert_forward.17} parent=1 // pred_region
      _
    $region13: #{bert_forward.17} parent=1 // pred_fallthru
      _
    // Predicated region
    $region14: #{bert_forward.17} parent=1 // pred_check
      _
    $region15: #{bert_forward.17} parent=1 // pred_check_branch
      %20 = sbr.rel (0) target = $region17
    $region16: #{bert_forward.17} parent=1 // pred_region
      _
    $region17: #{bert_forward.17} parent=1 // pred_fallthru
      _
    // Predicated region
    $region18: #{bert_forward.17} parent=1 // pred_check
      _
    $region19: #{bert_forward.17} parent=1 // pred_check_branch
      %22 = sbr.rel (0) target = $region21
    $region20: #{bert_forward.17} parent=1 // pred_region
      _
    $region21: #{bert_forward.17} parent=1 // pred_fallthru
      _
    // Predicated region
    $region22: #{bert_forward.17} parent=1 // pred_check
      _
    $region23: #{bert_forward.17} parent=1 // pred_check_branch
      %24 = sbr.rel (0) target = $region25
    $region24: #{bert_forward.17} parent=1 // pred_region
      _
    $region25: #{bert_forward.17} parent=1 // pred_fallthru
      _
    // Predicated region
    $region26: #{bert_forward.17} parent=1 // pred_check
      _
    $region27: #{bert_forward.17} parent=1 // pred_check_branch
      %26 = sbr.rel (0) target = $region29
    $region28: #{bert_forward.17} parent=1 // pred_region
      _
    $region29: #{bert_forward.17} parent=1 // pred_fallthru
      _
    %v28 = vld [vmem:[%s0] sm:$0xff]
    %v29 = vld [vmem:[%s0 + $0x8] sm:$0xff]
    %v30 = vpack.c.bf16 %v29, %v28
    %v31 = vld [vmem:[%s1] sm:$0xf]
    %v32 = vld [vmem:[%s1 + $0x4] sm:$0xf]
    %v33 = vld [vmem:[%s1 + $0x8] sm:$0xf]
    %v34 = vld [vmem:[%s1 + $0xc] sm:$0xf]
    %v35 = vld [vmem:[%s2] sm:$0x1]
    %v37 = vperm.slane %v35, 0
    %v43 = vunpack.c.l.b16 %v31
    %v44 = vunpack.c.l.b16 %v32
    %v45 = vunpack.c.l.b16 %v33
    %v46 = vunpack.c.l.b16 %v34
    %v47 = vpack.c.b16 %v44, %v43
    %v48 = vpack.c.b16 %v46, %v45
    %vm51 = vcmask 261120
    %v53 = vsel %vm51, %v30, 0
    %55 = vmatpush.bf16.msra.mxu0 0
    %56 = vmatpush.bf16.msra.mxu0 0
    %57 = vmatpush.bf16.msra.mxu0 0
    %58 = vmatpush.bf16.msra.mxu0 0
    %59 = vmatpush.bf16.msra.mxu0 0
    %60 = vmatpush.bf16.msra.mxu0 0
    %61 = vmatpush.bf16.msra.mxu0 %v48
    %62 = vmatpush.bf16.msra.mxu0 %v47
    %63 = vmatmul.bf16.gmra.mxu0 %v53
    %v64 = vpop.f32.mrf.mxu0
    %v65 = vadd.f32 %v37, %v64
    %v66 = vpop.f32.mrf.mxu0
    %v67 = vadd.f32 %v37, %v66
    %68 = vdwg.mxu0
    %v69 = vmul.f32 %v65, %v65
    %v70 = vmul.f32 %v67, %v67
    %v71 = vmul.f32 %v65, %v69
    %v72 = vmul.f32 %v67, %v70
    %v73 = vmul.f32 %v71, 0.044715
    %v74 = vmul.f32 %v72, 0.044715
    %v75 = vadd.f32 %v65, %v73
    %v76 = vadd.f32 %v67, %v74
    %v77 = vmul.f32 %v75, 0.7978846
    %v78 = vmul.f32 %v76, 0.7978846
    %v79 = vtanh.pop %v77
    %v80 = vtanh.pop %v78
    %v81 = vadd.f32 %v79, 1.0
    %v82 = vadd.f32 %v80, 1.0
    %v83 = vmul.f32 %v81, 0.5
    %v84 = vmul.f32 %v82, 0.5
    %v85 = vmul.f32 %v65, %v83
    %v86 = vmul.f32 %v67, %v84
    %v87 = vpack.c.bf16 %v86, %v85
    %v88 = vld [vmem:[%s3] sm:$0xf]
    %v89 = vld [vmem:[%s3 + $0x4] sm:$0xf]
    %v90 = vld [vmem:[%s3 + $0x8] sm:$0xf]
    %v91 = vld [vmem:[%s3 + $0xc] sm:$0xf]
    %v92 = vld [vmem:[%s3 + $0x10] sm:$0xf]
    %v93 = vld [vmem:[%s3 + $0x14] sm:$0xf]
    %v94 = vld [vmem:[%s3 + $0x18] sm:$0xf]
    %v95 = vld [vmem:[%s3 + $0x1c] sm:$0xf]
    %v96 = vld [vmem:[%s3 + $0x20] sm:$0xf]
    %v97 = vld [vmem:[%s3 + $0x24] sm:$0xf]
    %v98 = vld [vmem:[%s3 + $0x28] sm:$0xf]
    %v99 = vld [vmem:[%s3 + $0x2c] sm:$0xf]
    %v100 = vld [vmem:[%s3 + $0x30] sm:$0xf]
    %v101 = vld [vmem:[%s3 + $0x34] sm:$0xf]
    %v102 = vld [vmem:[%s3 + $0x38] sm:$0xf]
    %v103 = vld [vmem:[%s3 + $0x3c] sm:$0xf]
    %v104 = vld [vmem:[%s4] sm:$0x1]
    %v106 = vperm.slane %v104, 0
    %v124 = vunpack.c.l.b16 %v88
    %v125 = vunpack.c.l.b16 %v89
    %v126 = vunpack.c.l.b16 %v90
    %v127 = vunpack.c.l.b16 %v91
    %v128 = vunpack.c.l.b16 %v92
    %v129 = vunpack.c.l.b16 %v93
    %v130 = vunpack.c.l.b16 %v94
    %v131 = vunpack.c.l.b16 %v95
    %v132 = vunpack.c.l.b16 %v96
    %v133 = vunpack.c.l.b16 %v97
    %v134 = vunpack.c.l.b16 %v98
    %v135 = vunpack.c.l.b16 %v99
    %v136 = vunpack.c.l.b16 %v100
    %v137 = vunpack.c.l.b16 %v101
    %v138 = vunpack.c.l.b16 %v102
    %v139 = vunpack.c.l.b16 %v103
    %v140 = vpack.c.b16 %v125, %v124
    %v141 = vpack.c.b16 %v127, %v126
    %v142 = vpack.c.b16 %v129, %v128
    %v143 = vpack.c.b16 %v131, %v130
    %v144 = vpack.c.b16 %v133, %v132
    %v145 = vpack.c.b16 %v135, %v134
    %v146 = vpack.c.b16 %v137, %v136
    %v147 = vpack.c.b16 %v139, %v138
    %156 = vmatpush.bf16.msra.mxu0 %v147
    %157 = vmatpush.bf16.msra.mxu0 %v146
    %158 = vmatpush.bf16.msra.mxu0 %v145
    %159 = vmatpush.bf16.msra.mxu0 %v144
    %160 = vmatpush.bf16.msra.mxu0 %v143
    %161 = vmatpush.bf16.msra.mxu0 %v142
    %162 = vmatpush.bf16.msra.mxu0 %v141
    %163 = vmatpush.bf16.msra.mxu0 %v140
    %164 = vmatmul.bf16.gmra.mxu0 %v87
    %v165 = vpop.f32.mrf.mxu0
    %v166 = vadd.f32 %v106, %v165
    %v167 = vpop.f32.mrf.mxu0
    %v168 = vadd.f32 %v106, %v167
    %169 = vdwg.mxu0
    %v170 = vadd.f32 %v166, %v28
    %v171 = vadd.f32 %v168, %v29
    %v172 = vld [vmem:[%s5] sm:$0x1]
    %v173 = vld [vmem:[%s6] sm:$0x1]
    %v174 = vsel %vm51, %v170, 0.0
    %175 = vadd.xlane.f32.xlu0 %v174
    %v176 = vpop.xlane.xlu0 %175
    %v177 = vsel %vm51, %v171, 0.0
    %178 = vadd.xlane.f32.xlu0 %v177
    %v179 = vpop.xlane.xlu0 %178
    %v180 = vrcp.pop 32.0
    %v181 = vmul.f32 32.0, %v180
    %v182 = vsub.f32 1.0, %v181
    %v183 = vmul.f32 %v180, %v182
    %v184 = vadd.f32 %v180, %v183
    %vm185 = vweird.f32 %v180
    %v186 = vsel %vm185, %v180, %v184
    %v187 = vmul.f32 %v176, %v186
    %v188 = vmul.f32 %v179, %v186
    %v189 = vsub.f32 %v170, %v187
    %v190 = vsub.f32 %v171, %v188
    %v191 = vmul.f32 %v189, %v189
    %v192 = vmul.f32 %v190, %v190
    %v193 = vsel %vm51, %v191, 0.0
    %194 = vadd.xlane.f32.xlu0 %v193
    %v195 = vpop.xlane.xlu0 %194
    %v196 = vsel %vm51, %v192, 0.0
    %197 = vadd.xlane.f32.xlu0 %v196
    %v198 = vpop.xlane.xlu0 %197
    %v199 = vmul.f32 %v195, %v186
    %v200 = vmul.f32 %v198, %v186
    %v201 = vadd.f32 %v199, 1e-12
    %v202 = vadd.f32 %v200, 1e-12
    %v203 = vrsqrt.pop %v201
    %v204 = vmul.f32 %v203, %v201
    %v205 = vmul.f32 %v204, %v203
    %v206 = vmul.f32 0.5, %v205
    %v207 = vsub.f32 1.5, %v206
    %v208 = vmul.f32 %v203, %v207
    %vm209 = vweird.f32 %v201
    %vm210 = vweird.f32 %v203
    %vm211 = vmor %vm209, %vm210
    %v212 = vsel %vm211, %v203, %v208
    %v213 = vrsqrt.pop %v202
    %v214 = vmul.f32 %v213, %v202
    %v215 = vmul.f32 %v214, %v213
    %v216 = vmul.f32 0.5, %v215
    %v217 = vsub.f32 1.5, %v216
    %v218 = vmul.f32 %v213, %v217
    %vm219 = vweird.f32 %v202
    %vm220 = vweird.f32 %v213
    %vm221 = vmor %vm219, %vm220
    %v222 = vsel %vm221, %v213, %v218
    %v223 = vmul.f32 %v189, %v212
    %v224 = vmul.f32 %v190, %v222
    %v226 = vperm.slane %v172, 0
    %v228 = vmul.f32 %v223, %v226
    %v229 = vmul.f32 %v224, %v226
    %v231 = vperm.slane %v173, 0
    %v233 = vadd.f32 %v228, %v231
    %v234 = vadd.f32 %v229, %v231
    %235 = vst.msk [vmem:[#allocation2] sm:$0xff] %vm51, %v233
    %236 = vst.msk [vmem:[#allocation2 + $0x8] sm:$0xff] %vm51, %v234
    // Predicated region
    $region30: #{bert_forward.17} parent=1 // pred_check
      _
    $region31: #{bert_forward.17} parent=1 // pred_check_branch
      %238 = sbr.rel (0) target = $region33
    $region32: #{bert_forward.17} parent=1 // pred_region
      %240 = vsyncadd [#allocation3], 0
      %s241 = sshll.u32 [#allocation2], 4
      %s242 = int_to_ptr.vmem [resolvable:$true] %s241
      %s243 = sshll.u32 %s7, 4
      %s244 = int_to_ptr.hbm [resolvable:$true] %s243
      %249 = dma.vmem_to_hbm [thread:$0]  %s242, 256, %s244, [#allocation3], 128, 128, 8
    $region33: #{bert_forward.17} parent=1 // pred_fallthru
      _
    // Predicated region
    $region34: #{bert_forward.17} parent=1 // pred_check
      _
    $region35: #{bert_forward.17} parent=1 // pred_check_branch
      %251 = sbr.rel (0) target = $region37
    $region36: #{bert_forward.17} parent=1 // pred_region
      %253 = dma.done [#allocation3], 256
    $region37: #{bert_forward.17} parent=1 // pred_fallthru
      _
    %254 = vsyncpa [#allocation3], 1

</llo_original>
